<compile_context>
chip_gen: v6e
topology: v6e:2x2x1
jax: 0.10.0
libtpu: 0.0.40
codegen_flags: <defaults>
</compile_context>

<pallas_src>
import functools

import jax
import jax.numpy as jnp
import numpy as np
from jax import lax
from jax.experimental import pallas as pl
from jax.experimental.pallas import tpu as pltpu


# ----------------------------------------------------------------------------
# Fused kernel
# ----------------------------------------------------------------------------

def _make_fused_kernel(*, H, W, Cin, Chid, Cout, THo, Wo, stride, expand,
                       use_res):
    # number of padded input rows needed to produce THo output rows
    N_IN = stride * (THo - 1) + 3

    def kernel(*refs):
        if expand:
            (x_ref, w1_ref, b1_ref, wdw_ref, bdw_ref, w2_ref, b2_ref,
             o_ref) = refs[:8]
            scratch = refs[8:]
        else:
            (x_ref, wdw_ref, bdw_ref, w2_ref, b2_ref, o_ref) = refs[:6]
            scratch = refs[6:]
        hbuf = scratch[0]                       # (N_IN, W+2, Chid) f32
        dbuf = scratch[1] if stride == 2 else None

        r0 = pl.program_id(1) * THo             # first output row of this tile
        g0 = stride * r0 - 1                    # input row for hbuf row 0

        # ---- zero the left/right halo columns of the expanded buffer -------
        zcol = jnp.zeros((N_IN, 1, Chid), jnp.float32)
        hbuf[:, 0:1, :] = zcol
        hbuf[:, W + 1:W + 2, :] = zcol

        # ---- stage 1: expand 1x1 conv + BN + ReLU, kept in VMEM ------------
        if expand:
            w1 = w1_ref[...]                    # (Cin, Chid), BN-scale folded
            b1 = b1_ref[...]                    # (1, Chid)

        def expand_row(j, carry):
            g = g0 + j                          # global input row (may be OOB)
            valid = jnp.logical_and(g >= 0, g < H)
            gc = jnp.clip(g, 0, H - 1)
            xrow = x_ref[0, pl.ds(gc, 1), :, :].reshape(W, Cin)
            xrow = xrow.astype(jnp.float32)
            if expand:
                e = jnp.dot(xrow, w1, preferred_element_type=jnp.float32) + b1
                e = jnp.maximum(e, 0.0)
            else:
                e = xrow                        # expand_ratio == 1: no 1x1
            e = jnp.where(valid, e, 0.0)        # zero padding rows
            hbuf[pl.ds(j, 1), 1:W + 1, :] = e.reshape(1, W, Chid)
            return carry

        lax.fori_loop(0, N_IN, expand_row, 0)

        # ---- stage 2: 3x3 depthwise conv + BN + ReLU (VMEM only) -----------
        wdw = wdw_ref[...].astype(jnp.float32)  # (3, 3, Chid), loaded once
        bdw = bdw_ref[...]                      # (1, Chid)

        if stride == 1:                         # Wo == W here
            acc = jnp.zeros((THo, Wo, Chid), jnp.float32)
            for dy in range(3):
                for dx in range(3):
                    acc = acc + hbuf[dy:dy + THo, dx:dx + Wo, :] * wdw[dy, dx, :]
            d = jnp.maximum(acc + bdw, 0.0)
            d2 = d.reshape(THo * Wo, Chid)
        else:
            # stride 2 computed in-kernel: strided column taps, per output row
            def dw_row(jo, carry):
                acc = jnp.zeros((1, Wo, Chid), jnp.float32)
                for dy in range(3):
                    for dx in range(3):
                        tap = hbuf[pl.ds(2 * jo + dy, 1),
                                   pl.ds(dx, Wo, stride=2), :]
                        acc = acc + tap * wdw[dy, dx, :]
                dbuf[pl.ds(jo, 1), :, :] = jnp.maximum(acc + bdw, 0.0)
                return carry

            lax.fori_loop(0, THo, dw_row, 0)
            d2 = dbuf[...].reshape(THo * Wo, Chid)

        # ---- stage 3: project 1x1 conv + BN + ReLU (+ residual) ------------
        y = jnp.dot(d2, w2_ref[...], preferred_element_type=jnp.float32)
        y = jnp.maximum(y + b2_ref[...], 0.0).reshape(THo, Wo, Cout)
        if use_res:                             # stride==1 and Cin==Cout
            res = x_ref[0, pl.ds(r0, THo), :, :].astype(jnp.float32)
            y = y + res
        o_ref[0] = y.astype(o_ref.dtype)

    return kernel


# ----------------------------------------------------------------------------
# Wrappers
# ----------------------------------------------------------------------------

def _largest_divisor_at_most(n, target):
    t = max(1, min(n, target))
    while n % t != 0:
        t -= 1
    return t


def inverted_block_nhwc(x, params, *, ch_in, ch_out, expand_ratio, stride,
                        row_tile=8):
    """Fused InvertedBlock forward. x: (N, H, W, ch_in) NHWC."""
    assert stride in (1, 2)
    N, H, W, Cin = x.shape
    assert Cin == ch_in
    hidden = ch_in * expand_ratio
    expand = expand_ratio != 1
    use_res = (stride == 1) and (ch_in == ch_out)

    H_out = (H - 1) // stride + 1               # k=3, padding=1
    W_out = (W - 1) // stride + 1
    THo = _largest_divisor_at_most(H_out, row_tile)
    n_h = H_out // THo
    N_IN = stride * (THo - 1) + 3

    eps = 1e-5

    def fold(w, bn, is_dw=False):
        gamma, beta, mean, var = bn
        scale = gamma / jnp.sqrt(var + eps)
        shift = beta - mean * scale
        wf = w * scale if is_dw else w * scale[None, :]
        return wf.astype(jnp.float32), shift.reshape(1, -1).astype(jnp.float32)

    args = [x]
    in_specs = [pl.BlockSpec((1, H, W, Cin), lambda n, h: (n, 0, 0, 0))]
    if expand:
        w1f, b1 = fold(params["w1"], params["bn1"])
        args += [w1f, b1]
        in_specs += [pl.BlockSpec((Cin, hidden), lambda n, h: (0, 0)),
                     pl.BlockSpec((1, hidden), lambda n, h: (0, 0))]
    wdwf, bdw = fold(params["w_dw"], params["bn_dw"], is_dw=True)
    w2f, b2 = fold(params["w2"], params["bn2"])
    args += [wdwf, bdw, w2f, b2]
    in_specs += [pl.BlockSpec((3, 3, hidden), lambda n, h: (0, 0, 0)),
                 pl.BlockSpec((1, hidden), lambda n, h: (0, 0)),
                 pl.BlockSpec((hidden, ch_out), lambda n, h: (0, 0)),
                 pl.BlockSpec((1, ch_out), lambda n, h: (0, 0))]

    scratch = [pltpu.VMEM((N_IN, W + 2, hidden), jnp.float32)]
    if stride == 2:
        scratch.append(pltpu.VMEM((THo, W_out, hidden), jnp.float32))

    kernel = _make_fused_kernel(H=H, W=W, Cin=Cin, Chid=hidden, Cout=ch_out,
                                THo=THo, Wo=W_out, stride=stride,
                                expand=expand, use_res=use_res)

    return pl.pallas_call(
        kernel,
        out_shape=jax.ShapeDtypeStruct((N, H_out, W_out, ch_out), x.dtype),
        grid=(N, n_h),
        in_specs=in_specs,
        out_specs=pl.BlockSpec((1, THo, W_out, ch_out),
                               lambda n, h: (n, h, 0, 0)),
        scratch_shapes=scratch,
        compiler_params=pltpu.CompilerParams(
            dimension_semantics=("parallel", "parallel")),
    )(*args)


def inverted_block_forward(x_nchw, params, *, ch_in, ch_out, expand_ratio,
                           stride, row_tile=8):
    """NCHW wrapper matching the PyTorch module API (transposes at boundary)."""
    x = jnp.transpose(x_nchw, (0, 2, 3, 1))     # NCHW -> NHWC
    out = inverted_block_nhwc(x, params, ch_in=ch_in, ch_out=ch_out,
                              expand_ratio=expand_ratio, stride=stride,
                              row_tile=row_tile)
    return jnp.transpose(out, (0, 3, 1, 2))     # NHWC -> NCHW


# ----------------------------------------------------------------------------
# Pure-JAX reference (original un-fused semantics) for verification
# ----------------------------------------------------------------------------

def _ref_inverted_block(x_nchw, params, *, ch_in, ch_out, expand_ratio, stride):
    eps = 1e-5
    x = jnp.transpose(x_nchw, (0, 2, 3, 1)).astype(jnp.float32)

    def bn(y, p):
        gamma, beta, mean, var = p
        return (y - mean) / jnp.sqrt(var + eps) * gamma + beta

    h = x
    if expand_ratio != 1:
        h = jax.nn.relu(bn(jnp.einsum('nhwc,cd->nhwd', h, params["w1"]),
                           params["bn1"]))
    N, H, W, C = h.shape
    Ho = (H - 1) // stride + 1
    Wo = (W - 1) // stride + 1
    hp = jnp.pad(h, ((0, 0), (1, 1), (1, 1), (0, 0)))
    acc = jnp.zeros((N, Ho, Wo, C), jnp.float32)
    for dy in range(3):
        for dx in range(3):
            tap = hp[:, dy:dy + stride * (Ho - 1) + 1:stride,
                     dx:dx + stride * (Wo - 1) + 1:stride, :]
            acc = acc + tap * params["w_dw"][dy, dx, :]
    h = jax.nn.relu(bn(acc, params["bn_dw"]))
    h = jax.nn.relu(bn(jnp.einsum('nhwc,cd->nhwd', h, params["w2"]),
                       params["bn2"]))
    if stride == 1 and ch_in == ch_out:
        h = h + x
    return jnp.transpose(h, (0, 3, 1, 2))


# ----------------------------------------------------------------------------
# Deterministic synthetic parameters
# ----------------------------------------------------------------------------

def init_params(key, ch_in, ch_out, expand_ratio):
    hidden = ch_in * expand_ratio
    keys = jax.random.split(key, 6)

    def bn(k, c):
        kg, kb, km, kv = jax.random.split(k, 4)
        gamma = 1.0 + 0.1 * jax.random.normal(kg, (c,), jnp.float32)
        beta = 0.1 * jax.random.normal(kb, (c,), jnp.float32)
        mean = 0.1 * jax.random.normal(km, (c,), jnp.float32)
        var = 0.5 + jnp.abs(jax.random.normal(kv, (c,), jnp.float32))
        return (gamma, beta, mean, var)

    params = {}
    if expand_ratio != 1:
        params["w1"] = 0.2 * jax.random.normal(keys[0], (ch_in, hidden),
                                               jnp.float32)
        params["bn1"] = bn(keys[1], hidden)
    params["w_dw"] = 0.2 * jax.random.normal(keys[2], (3, 3, hidden),
                                             jnp.float32)
    params["bn_dw"] = bn(keys[3], hidden)
    params["w2"] = 0.2 * jax.random.normal(keys[4], (hidden, ch_out),
                                           jnp.float32)
    params["bn2"] = bn(keys[5], ch_out)
    return params


# ----------------------------------------------------------------------------

if __name__ == "__main__":
    key = jax.random.PRNGKey(0)
    N, HW = 2, 16
    configs = [
        dict(ch_in=4, ch_out=4, expand_ratio=2, stride=1),   # residual path
        dict(ch_in=4, ch_out=8, expand_ratio=3, stride=2),   # strided, no res
        dict(ch_in=4, ch_out=8, expand_ratio=1, stride=1),   # no expand conv
    ]
    for cfg in configs:
        kx, kp, key = jax.random.split(key, 3)
        x = jax.random.normal(kx, (N, cfg["ch_in"], HW, HW), jnp.float32)
        params = init_params(kp, cfg["ch_in"], cfg["ch_out"],
                             cfg["expand_ratio"])
        fwd = jax.jit(functools.partial(inverted_block_forward, **cfg))
        out = fwd(x, params)
        jax.block_until_ready(out)
        ref = _ref_inverted_block(x, params, **cfg)
        np.testing.assert_allclose(np.asarray(out), np.asarray(ref),
                                   rtol=1e-3, atol=1e-3)
    print("KERNEL_OK")
</pallas_src>

<mosaic_0001>
module attributes {stable_mosaic.version = 11 : i64} {
  func.func @kernel(%arg0: i32, %arg1: i32, %arg2: memref<1x16x16x4xf32, #tpu.memory_space<vmem>>, %arg3: memref<4x8xf32, #tpu.memory_space<vmem>>, %arg4: memref<1x8xf32, #tpu.memory_space<vmem>>, %arg5: memref<3x3x8xf32, #tpu.memory_space<vmem>>, %arg6: memref<1x8xf32, #tpu.memory_space<vmem>>, %arg7: memref<8x4xf32, #tpu.memory_space<vmem>>, %arg8: memref<1x4xf32, #tpu.memory_space<vmem>>, %arg9: memref<1x8x16x4xf32, #tpu.memory_space<vmem>>, %arg10: memref<10x18x8xf32, #tpu.memory_space<vmem>>) attributes {dimension_semantics = [#tpu.dimension_semantics<parallel>, #tpu.dimension_semantics<parallel>], iteration_bounds = array<i64: 2, 2>, scalar_prefetch = 0 : i64, scratch_operands = 1 : i64, tpu.core_type = #tpu.core_type<tc>, window_params = [{transform_indices = @transform_0, window_bounds = array<i64: 1, 16, 16, 4>}, {pipeline_mode = #tpu.pipeline_mode<synchronous>, transform_indices = @transform_1, window_bounds = array<i64: 4, 8>}, {pipeline_mode = #tpu.pipeline_mode<synchronous>, transform_indices = @transform_2, window_bounds = array<i64: 1, 8>}, {pipeline_mode = #tpu.pipeline_mode<synchronous>, transform_indices = @transform_3, window_bounds = array<i64: 3, 3, 8>}, {pipeline_mode = #tpu.pipeline_mode<synchronous>, transform_indices = @transform_4, window_bounds = array<i64: 1, 8>}, {pipeline_mode = #tpu.pipeline_mode<synchronous>, transform_indices = @transform_5, window_bounds = array<i64: 8, 4>}, {pipeline_mode = #tpu.pipeline_mode<synchronous>, transform_indices = @transform_6, window_bounds = array<i64: 1, 4>}, {transform_indices = @transform_7, window_bounds = array<i64: 1, 8, 16, 4>}]} {
    %c8_i32 = arith.constant 8 : i32
    %0 = arith.muli %arg1, %c8_i32 : i32
    %c1_i32 = arith.constant 1 : i32
    %1 = arith.muli %c1_i32, %0 : i32
    %c1_i32_0 = arith.constant 1 : i32
    %2 = arith.subi %1, %c1_i32_0 : i32
    %cst = arith.constant 0.000000e+00 : f32
    %3 = vector.broadcast %cst : f32 to vector<10x1x8xf32>
    %c0 = arith.constant 0 : index
    %c0_1 = arith.constant 0 : index
    %c0_2 = arith.constant 0 : index
    %4 = vector.load %arg10[%c0, %c0_1, %c0_2] : memref<10x18x8xf32, #tpu.memory_space<vmem>>, vector<10x1x8xf32>
    tpu.vector_store %arg10[%c0, %c0_1, %c0_2], %3 {strides = array<i32>} : memref<10x18x8xf32, #tpu.memory_space<vmem>>, vector<10x1x8xf32>,
    %c0_3 = arith.constant 0 : index
    %c17 = arith.constant 17 : index
    %c0_4 = arith.constant 0 : index
    %5 = vector.load %arg10[%c0_3, %c17, %c0_4] : memref<10x18x8xf32, #tpu.memory_space<vmem>>, vector<10x1x8xf32>
    tpu.vector_store %arg10[%c0_3, %c17, %c0_4], %3 {strides = array<i32>} : memref<10x18x8xf32, #tpu.memory_space<vmem>>, vector<10x1x8xf32>,
    %c0_5 = arith.constant 0 : index
    %c0_6 = arith.constant 0 : index
    %6 = vector.load %arg3[%c0_5, %c0_6] : memref<4x8xf32, #tpu.memory_space<vmem>>, vector<4x8xf32>
    %c0_7 = arith.constant 0 : index
    %c0_8 = arith.constant 0 : index
    %7 = vector.load %arg4[%c0_7, %c0_8] : memref<1x8xf32, #tpu.memory_space<vmem>>, vector<1x8xf32>
    %c0_i32 = arith.constant 0 : i32
    %c10_i32 = arith.constant 10 : i32
    %8 = arith.addi %c0_i32, %c10_i32 : i32
    %c1_i32_9 = arith.constant 1 : i32
    scf.for %arg11 = %c0_i32 to %8 step %c1_i32_9  : i32 {
      %96 = arith.addi %2, %arg11 : i32
      %c0_i32_56 = arith.constant 0 : i32
      %97 = arith.cmpi sge, %96, %c0_i32_56 : i32
      %c16_i32 = arith.constant 16 : i32
      %98 = arith.cmpi slt, %96, %c16_i32 : i32
      %99 = arith.andi %97, %98 : i1
      %c0_i32_57 = arith.constant 0 : i32
      %c15_i32 = arith.constant 15 : i32
      %100 = arith.maxsi %c0_i32_57, %96 : i32
      %101 = arith.minsi %c15_i32, %100 : i32
      %c0_58 = arith.constant 0 : index
      %102 = arith.index_cast %101 : i32 to index
      %c0_59 = arith.constant 0 : index
      %c0_60 = arith.constant 0 : index
      %103 = vector.load %arg2[%c0_58, %102, %c0_59, %c0_60] : memref<1x16x16x4xf32, #tpu.memory_space<vmem>>, vector<1x1x16x4xf32>
      %104 = vector.shape_cast %103 : vector<1x1x16x4xf32> to vector<1x16x4xf32>
      %105 = vector.shape_cast %104 : vector<1x16x4xf32> to vector<16x4xf32>
      %cst_61 = arith.constant dense<0.000000e+00> : vector<16x8xf32>
      %106 = tpu.matmul %105, %6, %cst_61 {dimension_numbers = #tpu.dot_dimension_numbers<[1], [0], [0], [1], [0, 0, 1, 1], [], []>} : vector<16x4xf32>, vector<4x8xf32>, vector<16x8xf32> -> vector<16x8xf32>
      %107 = vector.broadcast %7 : vector<1x8xf32> to vector<16x8xf32>
      %108 = arith.addf %106, %107 : vector<16x8xf32>
      %cst_62 = arith.constant 0.000000e+00 : f32
      %109 = vector.broadcast %cst_62 : f32 to vector<16x8xf32>
      %110 = arith.maximumf %108, %109 : vector<16x8xf32>
      %cst_63 = arith.constant 0.000000e+00 : f32
      %111 = vector.broadcast %cst_63 : f32 to vector<16x8xf32>
      %112 = arith.select %99, %110, %111 : vector<16x8xf32>
      %113 = vector.shape_cast %112 : vector<16x8xf32> to vector<1x16x8xf32>
      %114 = arith.index_cast %arg11 : i32 to index
      %c1_64 = arith.constant 1 : index
      %c0_65 = arith.constant 0 : index
      %115 = vector.load %arg10[%114, %c1_64, %c0_65] : memref<10x18x8xf32, #tpu.memory_space<vmem>>, vector<1x16x8xf32>
      tpu.vector_store %arg10[%114, %c1_64, %c0_65], %113 {strides = array<i32>} : memref<10x18x8xf32, #tpu.memory_space<vmem>>, vector<1x16x8xf32>,
    }
    %c10_i32_10 = arith.constant 10 : i32
    %c0_11 = arith.constant 0 : index
    %c0_12 = arith.constant 0 : index
    %c0_13 = arith.constant 0 : index
    %9 = vector.load %arg5[%c0_11, %c0_12, %c0_13] : memref<3x3x8xf32, #tpu.memory_space<vmem>>, vector<3x3x8xf32>
    %c0_14 = arith.constant 0 : index
    %c0_15 = arith.constant 0 : index
    %10 = vector.load %arg6[%c0_14, %c0_15] : memref<1x8xf32, #tpu.memory_space<vmem>>, vector<1x8xf32>
    %cst_16 = arith.constant 0.000000e+00 : f32
    %11 = vector.broadcast %cst_16 : f32 to vector<8x16x8xf32>
    %c0_17 = arith.constant 0 : index
    %c0_18 = arith.constant 0 : index
    %c0_19 = arith.constant 0 : index
    %12 = vector.load %arg10[%c0_17, %c0_18, %c0_19] : memref<10x18x8xf32, #tpu.memory_space<vmem>>, vector<8x16x8xf32>
    %13 = vector.extract_strided_slice %9 {offsets = [0, 0, 0], sizes = [1, 1, 8], strides = [1, 1, 1]} : vector<3x3x8xf32> to vector<1x1x8xf32>
    %14 = vector.shape_cast %13 : vector<1x1x8xf32> to vector<8xf32>
    %15 = vector.shape_cast %14 : vector<8xf32> to vector<1x1x8xf32>
    %16 = vector.broadcast %15 : vector<1x1x8xf32> to vector<8x16x8xf32>
    %17 = arith.mulf %12, %16 : vector<8x16x8xf32>
    %18 = arith.addf %11, %17 : vector<8x16x8xf32>
    %c0_20 = arith.constant 0 : index
    %c1 = arith.constant 1 : index
    %c0_21 = arith.constant 0 : index
    %19 = vector.load %arg10[%c0_20, %c1, %c0_21] : memref<10x18x8xf32, #tpu.memory_space<vmem>>, vector<8x16x8xf32>
    %20 = vector.extract_strided_slice %9 {offsets = [0, 1, 0], sizes = [1, 1, 8], strides = [1, 1, 1]} : vector<3x3x8xf32> to vector<1x1x8xf32>
    %21 = vector.shape_cast %20 : vector<1x1x8xf32> to vector<8xf32>
    %22 = vector.shape_cast %21 : vector<8xf32> to vector<1x1x8xf32>
    %23 = vector.broadcast %22 : vector<1x1x8xf32> to vector<8x16x8xf32>
    %24 = arith.mulf %19, %23 : vector<8x16x8xf32>
    %25 = arith.addf %18, %24 : vector<8x16x8xf32>
    %c0_22 = arith.constant 0 : index
    %c2 = arith.constant 2 : index
    %c0_23 = arith.constant 0 : index
    %26 = vector.load %arg10[%c0_22, %c2, %c0_23] : memref<10x18x8xf32, #tpu.memory_space<vmem>>, vector<8x16x8xf32>
    %27 = vector.extract_strided_slice %9 {offsets = [0, 2, 0], sizes = [1, 1, 8], strides = [1, 1, 1]} : vector<3x3x8xf32> to vector<1x1x8xf32>
    %28 = vector.shape_cast %27 : vector<1x1x8xf32> to vector<8xf32>
    %29 = vector.shape_cast %28 : vector<8xf32> to vector<1x1x8xf32>
    %30 = vector.broadcast %29 : vector<1x1x8xf32> to vector<8x16x8xf32>
    %31 = arith.mulf %26, %30 : vector<8x16x8xf32>
    %32 = arith.addf %25, %31 : vector<8x16x8xf32>
    %c1_24 = arith.constant 1 : index
    %c0_25 = arith.constant 0 : index
    %c0_26 = arith.constant 0 : index
    %33 = vector.load %arg10[%c1_24, %c0_25, %c0_26] : memref<10x18x8xf32, #tpu.memory_space<vmem>>, vector<8x16x8xf32>
    %34 = vector.extract_strided_slice %9 {offsets = [1, 0, 0], sizes = [1, 1, 8], strides = [1, 1, 1]} : vector<3x3x8xf32> to vector<1x1x8xf32>
    %35 = vector.shape_cast %34 : vector<1x1x8xf32> to vector<8xf32>
    %36 = vector.shape_cast %35 : vector<8xf32> to vector<1x1x8xf32>
    %37 = vector.broadcast %36 : vector<1x1x8xf32> to vector<8x16x8xf32>
    %38 = arith.mulf %33, %37 : vector<8x16x8xf32>
    %39 = arith.addf %32, %38 : vector<8x16x8xf32>
    %c1_27 = arith.constant 1 : index
    %c1_28 = arith.constant 1 : index
    %c0_29 = arith.constant 0 : index
    %40 = vector.load %arg10[%c1_27, %c1_28, %c0_29] : memref<10x18x8xf32, #tpu.memory_space<vmem>>, vector<8x16x8xf32>
    %41 = vector.extract_strided_slice %9 {offsets = [1, 1, 0], sizes = [1, 1, 8], strides = [1, 1, 1]} : vector<3x3x8xf32> to vector<1x1x8xf32>
    %42 = vector.shape_cast %41 : vector<1x1x8xf32> to vector<8xf32>
    %43 = vector.shape_cast %42 : vector<8xf32> to vector<1x1x8xf32>
    %44 = vector.broadcast %43 : vector<1x1x8xf32> to vector<8x16x8xf32>
    %45 = arith.mulf %40, %44 : vector<8x16x8xf32>
    %46 = arith.addf %39, %45 : vector<8x16x8xf32>
    %c1_30 = arith.constant 1 : index
    %c2_31 = arith.constant 2 : index
    %c0_32 = arith.constant 0 : index
    %47 = vector.load %arg10[%c1_30, %c2_31, %c0_32] : memref<10x18x8xf32, #tpu.memory_space<vmem>>, vector<8x16x8xf32>
    %48 = vector.extract_strided_slice %9 {offsets = [1, 2, 0], sizes = [1, 1, 8], strides = [1, 1, 1]} : vector<3x3x8xf32> to vector<1x1x8xf32>
    %49 = vector.shape_cast %48 : vector<1x1x8xf32> to vector<8xf32>
    %50 = vector.shape_cast %49 : vector<8xf32> to vector<1x1x8xf32>
    %51 = vector.broadcast %50 : vector<1x1x8xf32> to vector<8x16x8xf32>
    %52 = arith.mulf %47, %51 : vector<8x16x8xf32>
    %53 = arith.addf %46, %52 : vector<8x16x8xf32>
    %c2_33 = arith.constant 2 : index
    %c0_34 = arith.constant 0 : index
    %c0_35 = arith.constant 0 : index
    %54 = vector.load %arg10[%c2_33, %c0_34, %c0_35] : memref<10x18x8xf32, #tpu.memory_space<vmem>>, vector<8x16x8xf32>
    %55 = vector.extract_strided_slice %9 {offsets = [2, 0, 0], sizes = [1, 1, 8], strides = [1, 1, 1]} : vector<3x3x8xf32> to vector<1x1x8xf32>
    %56 = vector.shape_cast %55 : vector<1x1x8xf32> to vector<8xf32>
    %57 = vector.shape_cast %56 : vector<8xf32> to vector<1x1x8xf32>
    %58 = vector.broadcast %57 : vector<1x1x8xf32> to vector<8x16x8xf32>
    %59 = arith.mulf %54, %58 : vector<8x16x8xf32>
    %60 = arith.addf %53, %59 : vector<8x16x8xf32>
    %c2_36 = arith.constant 2 : index
    %c1_37 = arith.constant 1 : index
    %c0_38 = arith.constant 0 : index
    %61 = vector.load %arg10[%c2_36, %c1_37, %c0_38] : memref<10x18x8xf32, #tpu.memory_space<vmem>>, vector<8x16x8xf32>
    %62 = vector.extract_strided_slice %9 {offsets = [2, 1, 0], sizes = [1, 1, 8], strides = [1, 1, 1]} : vector<3x3x8xf32> to vector<1x1x8xf32>
    %63 = vector.shape_cast %62 : vector<1x1x8xf32> to vector<8xf32>
    %64 = vector.shape_cast %63 : vector<8xf32> to vector<1x1x8xf32>
    %65 = vector.broadcast %64 : vector<1x1x8xf32> to vector<8x16x8xf32>
    %66 = arith.mulf %61, %65 : vector<8x16x8xf32>
    %67 = arith.addf %60, %66 : vector<8x16x8xf32>
    %c2_39 = arith.constant 2 : index
    %c2_40 = arith.constant 2 : index
    %c0_41 = arith.constant 0 : index
    %68 = vector.load %arg10[%c2_39, %c2_40, %c0_41] : memref<10x18x8xf32, #tpu.memory_space<vmem>>, vector<8x16x8xf32>
    %69 = vector.extract_strided_slice %9 {offsets = [2, 2, 0], sizes = [1, 1, 8], strides = [1, 1, 1]} : vector<3x3x8xf32> to vector<1x1x8xf32>
    %70 = vector.shape_cast %69 : vector<1x1x8xf32> to vector<8xf32>
    %71 = vector.shape_cast %70 : vector<8xf32> to vector<1x1x8xf32>
    %72 = vector.broadcast %71 : vector<1x1x8xf32> to vector<8x16x8xf32>
    %73 = arith.mulf %68, %72 : vector<8x16x8xf32>
    %74 = arith.addf %67, %73 : vector<8x16x8xf32>
    %75 = vector.shape_cast %10 : vector<1x8xf32> to vector<1x1x8xf32>
    %76 = vector.broadcast %75 : vector<1x1x8xf32> to vector<8x16x8xf32>
    %77 = arith.addf %74, %76 : vector<8x16x8xf32>
    %cst_42 = arith.constant 0.000000e+00 : f32
    %78 = vector.broadcast %cst_42 : f32 to vector<8x16x8xf32>
    %79 = arith.maximumf %77, %78 : vector<8x16x8xf32>
    %80 = vector.shape_cast %79 : vector<8x16x8xf32> to vector<128x8xf32>
    %c0_43 = arith.constant 0 : index
    %c0_44 = arith.constant 0 : index
    %81 = vector.load %arg7[%c0_43, %c0_44] : memref<8x4xf32, #tpu.memory_space<vmem>>, vector<8x4xf32>
    %cst_45 = arith.constant dense<0.000000e+00> : vector<128x4xf32>
    %82 = tpu.matmul %80, %81, %cst_45 {dimension_numbers = #tpu.dot_dimension_numbers<[1], [0], [0], [1], [0, 0, 1, 1], [], []>} : vector<128x8xf32>, vector<8x4xf32>, vector<128x4xf32> -> vector<128x4xf32>
    %c0_46 = arith.constant 0 : index
    %c0_47 = arith.constant 0 : index
    %83 = vector.load %arg8[%c0_46, %c0_47] : memref<1x4xf32, #tpu.memory_space<vmem>>, vector<1x4xf32>
    %84 = vector.broadcast %83 : vector<1x4xf32> to vector<128x4xf32>
    %85 = arith.addf %82, %84 : vector<128x4xf32>
    %cst_48 = arith.constant 0.000000e+00 : f32
    %86 = vector.broadcast %cst_48 : f32 to vector<128x4xf32>
    %87 = arith.maximumf %85, %86 : vector<128x4xf32>
    %88 = vector.shape_cast %87 : vector<128x4xf32> to vector<8x16x4xf32>
    %c0_49 = arith.constant 0 : index
    %89 = arith.index_cast %0 : i32 to index
    %c0_50 = arith.constant 0 : index
    %c0_51 = arith.constant 0 : index
    %90 = vector.load %arg2[%c0_49, %89, %c0_50, %c0_51] : memref<1x16x16x4xf32, #tpu.memory_space<vmem>>, vector<1x8x16x4xf32>
    %91 = vector.shape_cast %90 : vector<1x8x16x4xf32> to vector<8x16x4xf32>
    %92 = arith.addf %88, %91 : vector<8x16x4xf32>
    %c0_52 = arith.constant 0 : index
    %c0_53 = arith.constant 0 : index
    %c0_54 = arith.constant 0 : index
    %c0_55 = arith.constant 0 : index
    %93 = vector.load %arg9[%c0_52, %c0_53, %c0_54, %c0_55] : memref<1x8x16x4xf32, #tpu.memory_space<vmem>>, vector<1x8x16x4xf32>
    %94 = vector.shape_cast %93 : vector<1x8x16x4xf32> to vector<8x16x4xf32>
    %95 = vector.shape_cast %92 : vector<8x16x4xf32> to vector<1x8x16x4xf32>
    tpu.vector_store %arg9[%c0_52, %c0_53, %c0_54, %c0_55], %95 {strides = array<i32>} : memref<1x8x16x4xf32, #tpu.memory_space<vmem>>, vector<1x8x16x4xf32>,
    return
  }
  func.func @transform_0(%arg0: i32, %arg1: i32) -> (i32, i32, i32, i32) {
    %c0_i32 = arith.constant 0 : i32
    %c0_i32_0 = arith.constant 0 : i32
    %c0_i32_1 = arith.constant 0 : i32
    %c0_i32_2 = arith.constant 0 : i32
    return %arg0, %c0_i32, %c0_i32_0, %c0_i32_1 : i32, i32, i32, i32
  }
  func.func @transform_1(%arg0: i32, %arg1: i32) -> (i32, i32) {
    %c0_i32 = arith.constant 0 : i32
    %c0_i32_0 = arith.constant 0 : i32
    %c0_i32_1 = arith.constant 0 : i32
    return %c0_i32, %c0_i32_0 : i32, i32
  }
  func.func @transform_2(%arg0: i32, %arg1: i32) -> (i32, i32) {
    %c0_i32 = arith.constant 0 : i32
    %c0_i32_0 = arith.constant 0 : i32
    %c0_i32_1 = arith.constant 0 : i32
    return %c0_i32, %c0_i32_0 : i32, i32
  }
  func.func @transform_3(%arg0: i32, %arg1: i32) -> (i32, i32, i32) {
    %c0_i32 = arith.constant 0 : i32
    %c0_i32_0 = arith.constant 0 : i32
    %c0_i32_1 = arith.constant 0 : i32
    %c0_i32_2 = arith.constant 0 : i32
    return %c0_i32, %c0_i32_0, %c0_i32_1 : i32, i32, i32
  }
  func.func @transform_4(%arg0: i32, %arg1: i32) -> (i32, i32) {
    %c0_i32 = arith.constant 0 : i32
    %c0_i32_0 = arith.constant 0 : i32
    %c0_i32_1 = arith.constant 0 : i32
    return %c0_i32, %c0_i32_0 : i32, i32
  }
  func.func @transform_5(%arg0: i32, %arg1: i32) -> (i32, i32) {
    %c0_i32 = arith.constant 0 : i32
    %c0_i32_0 = arith.constant 0 : i32
    %c0_i32_1 = arith.constant 0 : i32
    return %c0_i32, %c0_i32_0 : i32, i32
  }
  func.func @transform_6(%arg0: i32, %arg1: i32) -> (i32, i32) {
    %c0_i32 = arith.constant 0 : i32
    %c0_i32_0 = arith.constant 0 : i32
    %c0_i32_1 = arith.constant 0 : i32
    return %c0_i32, %c0_i32_0 : i32, i32
  }
  func.func @transform_7(%arg0: i32, %arg1: i32) -> (i32, i32, i32, i32) {
    %c0_i32 = arith.constant 0 : i32
    %c0_i32_0 = arith.constant 0 : i32
    %c0_i32_1 = arith.constant 0 : i32
    return %arg0, %arg1, %c0_i32, %c0_i32_0 : i32, i32, i32, i32
  }
}

</mosaic_0001>

<llo_original>
// kernel: inverted_block_forward.1
$region0: #{inverted_block_forward.1}
  #allocation0 [shape = 'u32[]', space=smem, size = 0x4, offset = 0x4, fixed_abs, tag = 'smem constant byte address 0x4 - core index']
  #allocation1 [shape = 'u32[144,128]{1,0:T(1,128)}', space=vmem, size = 0x12000, scoped, tag = 'internal scratch']
  #allocation2 [shape = 'f32[10,18,8]{2,1,0:T(8,128)}', space=vmem, size = 0x1e000, scoped, tag = 'scratch operand']
  %s0 = inlined_call_operand.vmem [shape: f32[2,16,16,4], index: 0, kind: input, shape index: {}]
  %s1 = inlined_call_operand.vmem [shape: f32[4,8], index: 1, kind: input, shape index: {}]
  %s2 = inlined_call_operand.vmem [shape: f32[1,8], index: 2, kind: input, shape index: {}]
  %s3 = inlined_call_operand.vmem [shape: f32[3,3,8], index: 3, kind: input, shape index: {}]
  %s4 = inlined_call_operand.vmem [shape: f32[1,8], index: 4, kind: input, shape index: {}]
  %s5 = inlined_call_operand.vmem [shape: f32[8,4], index: 5, kind: input, shape index: {}]
  %s6 = inlined_call_operand.vmem [shape: f32[1,4], index: 6, kind: input, shape index: {}]
  %s7 = inlined_call_operand.vmem [shape: f32[2,16,16,4], index: 7, kind: output, shape index: {}]
  %s8 = sld [smem:[#allocation0]]
  $region68: #{inverted_block_forward.1} parent=0
    _
  %s10 = ssub.s32 1, %s8
  %s11 = scalar_select 0, %s10, %s8
  loop: start=0, step=1, limit=6
  $region2: #{inverted_block_forward.1} parent=0 // loop_pre_header
    _
  $region3: #{inverted_block_forward.1} parent=0 // loop_header
    %s13 = sphi 0, %s17
    %p14 = scmp.ge.s32.totalorder %s13, 6
    %s20 = sphi 0, %s32
    %s21 = sphi 0, %s28
    %s22 = sphi 0, %s20
    %s23 = sphi 0, %s21
    %s24 = sphi 0, %s22
    %s25 = sphi 0, %s23
    %s35 = sphi 0, %s37
    %s38 = sphi 0, %s35
    %s39 = sphi 0, %s38
    %s55 = sphi 0, %s39
    %s59 = sphi 0, %s59
    %s61 = sphi 0, %s59
    %s62 = sphi 0, %s61
    %s76 = sphi 0, %s62
    %s80 = sphi 0, %s80
    %s82 = sphi 0, %s80
    %s83 = sphi 0, %s82
    %s97 = sphi 0, %s83
    %s101 = sphi 0, %s101
    %s103 = sphi 0, %s101
    %s104 = sphi 0, %s103
    %s118 = sphi 0, %s104
    %s122 = sphi 0, %s122
    %s124 = sphi 0, %s122
    %s125 = sphi 0, %s124
    %s139 = sphi 0, %s125
    %s143 = sphi 0, %s143
    %s145 = sphi 0, %s143
    %s146 = sphi 0, %s145
    %s160 = sphi 0, %s146
    %s164 = sphi 0, %s164
    %s166 = sphi 0, %s164
    %s167 = sphi 0, %s166
    %s181 = sphi 0, %s167
    %s189 = sphi 0, %s191
    %s192 = sphi 0, %s189
    %s193 = sphi 0, %s192
    %s209 = sphi 0, %s193
  $region4: #{inverted_block_forward.1} parent=0 // loop_header_branch
    %16 = sbr.rel (%p14) target = $region8
  $region5: #{inverted_block_forward.1} parent=0 // loop_body
    %s18 = ssub.s32 %s13, 1
    %s19 = ssub.s32 %s13, 2
    %s26 = sadd.s32 1, %s21
    %p27 = scmp.ge.s32.totalorder %s26, 2
    %s28 = scalar_select %p27, 0, %s26
    %s29 = sadd.s32 1, %s20
    %s30 = scalar_select %p27, %s29, %s20
    %p31 = scmp.ge.s32.totalorder %s30, 2
    %s32 = scalar_select %p31, 0, %s30
    %s33 = ssub.s32 %s20, %s32
    %p34 = scmp.eq.s32.totalorder %s33, 0
    %s36 = sadd.s32 %s35, 1
    %s37 = scalar_select %p34, %s35, %s36
    %p40 = pneg %p34
    %p41 = scmp.eq.s32.totalorder %s13, 3
    %p42 = por %p40, %p41
    %p43 = scmp.ne.s32.totalorder %s35, %s38
    %p44 = scmp.eq.s32.totalorder %s13, 0
    %p45 = por %p43, %p44
    %p46 = scmp.ne.s32.totalorder %s35, %s38
    %p47 = scmp.eq.s32.totalorder %s18, 3
    %p48 = por %p46, %p47
    %p49 = scmp.ne.s32.totalorder %s38, %s39
    %p50 = scmp.eq.s32.totalorder %s18, 0
    %p51 = por %p49, %p50
    %p52 = scmp.ne.s32.totalorder %s38, %s39
    %p53 = scmp.eq.s32.totalorder %s19, 3
    %p54 = por %p52, %p53
    %p56 = scmp.ne.s32.totalorder %s39, %s55
    %p57 = scmp.eq.s32.totalorder %s19, 0
    %p58 = por %p56, %p57
    %s60 = sadd.s32 %s59, 1
    %p63 = scmp.eq.s32.totalorder %s13, 3
    %p64 = scmp.ne.s32.totalorder %s59, %s61
    %p65 = scmp.eq.s32.totalorder %s13, 0
    %p66 = por %p64, %p65
    %p67 = scmp.ne.s32.totalorder %s59, %s61
    %p68 = scmp.eq.s32.totalorder %s18, 3
    %p69 = por %p67, %p68
    %p70 = scmp.ne.s32.totalorder %s61, %s62
    %p71 = scmp.eq.s32.totalorder %s18, 0
    %p72 = por %p70, %p71
    %p73 = scmp.ne.s32.totalorder %s61, %s62
    %p74 = scmp.eq.s32.totalorder %s19, 3
    %p75 = por %p73, %p74
    %p77 = scmp.ne.s32.totalorder %s62, %s76
    %p78 = scmp.eq.s32.totalorder %s19, 0
    %p79 = por %p77, %p78
    %s81 = sadd.s32 %s80, 1
    %p84 = scmp.eq.s32.totalorder %s13, 3
    %p85 = scmp.ne.s32.totalorder %s80, %s82
    %p86 = scmp.eq.s32.totalorder %s13, 0
    %p87 = por %p85, %p86
    %p88 = scmp.ne.s32.totalorder %s80, %s82
    %p89 = scmp.eq.s32.totalorder %s18, 3
    %p90 = por %p88, %p89
    %p91 = scmp.ne.s32.totalorder %s82, %s83
    %p92 = scmp.eq.s32.totalorder %s18, 0
    %p93 = por %p91, %p92
    %p94 = scmp.ne.s32.totalorder %s82, %s83
    %p95 = scmp.eq.s32.totalorder %s19, 3
    %p96 = por %p94, %p95
    %p98 = scmp.ne.s32.totalorder %s83, %s97
    %p99 = scmp.eq.s32.totalorder %s19, 0
    %p100 = por %p98, %p99
    %s102 = sadd.s32 %s101, 1
    %p105 = scmp.eq.s32.totalorder %s13, 3
    %p106 = scmp.ne.s32.totalorder %s101, %s103
    %p107 = scmp.eq.s32.totalorder %s13, 0
    %p108 = por %p106, %p107
    %p109 = scmp.ne.s32.totalorder %s101, %s103
    %p110 = scmp.eq.s32.totalorder %s18, 3
    %p111 = por %p109, %p110
    %p112 = scmp.ne.s32.totalorder %s103, %s104
    %p113 = scmp.eq.s32.totalorder %s18, 0
    %p114 = por %p112, %p113
    %p115 = scmp.ne.s32.totalorder %s103, %s104
    %p116 = scmp.eq.s32.totalorder %s19, 3
    %p117 = por %p115, %p116
    %p119 = scmp.ne.s32.totalorder %s104, %s118
    %p120 = scmp.eq.s32.totalorder %s19, 0
    %p121 = por %p119, %p120
    %s123 = sadd.s32 %s122, 1
    %p126 = scmp.eq.s32.totalorder %s13, 3
    %p127 = scmp.ne.s32.totalorder %s122, %s124
    %p128 = scmp.eq.s32.totalorder %s13, 0
    %p129 = por %p127, %p128
    %p130 = scmp.ne.s32.totalorder %s122, %s124
    %p131 = scmp.eq.s32.totalorder %s18, 3
    %p132 = por %p130, %p131
    %p133 = scmp.ne.s32.totalorder %s124, %s125
    %p134 = scmp.eq.s32.totalorder %s18, 0
    %p135 = por %p133, %p134
    %p136 = scmp.ne.s32.totalorder %s124, %s125
    %p137 = scmp.eq.s32.totalorder %s19, 3
    %p138 = por %p136, %p137
    %p140 = scmp.ne.s32.totalorder %s125, %s139
    %p141 = scmp.eq.s32.totalorder %s19, 0
    %p142 = por %p140, %p141
    %s144 = sadd.s32 %s143, 1
    %p147 = scmp.eq.s32.totalorder %s13, 3
    %p148 = scmp.ne.s32.totalorder %s143, %s145
    %p149 = scmp.eq.s32.totalorder %s13, 0
    %p150 = por %p148, %p149
    %p151 = scmp.ne.s32.totalorder %s143, %s145
    %p152 = scmp.eq.s32.totalorder %s18, 3
    %p153 = por %p151, %p152
    %p154 = scmp.ne.s32.totalorder %s145, %s146
    %p155 = scmp.eq.s32.totalorder %s18, 0
    %p156 = por %p154, %p155
    %p157 = scmp.ne.s32.totalorder %s145, %s146
    %p158 = scmp.eq.s32.totalorder %s19, 3
    %p159 = por %p157, %p158
    %p161 = scmp.ne.s32.totalorder %s146, %s160
    %p162 = scmp.eq.s32.totalorder %s19, 0
    %p163 = por %p161, %p162
    %s165 = sadd.s32 %s164, 1
    %p168 = scmp.eq.s32.totalorder %s13, 3
    %p169 = scmp.ne.s32.totalorder %s164, %s166
    %p170 = scmp.eq.s32.totalorder %s13, 0
    %p171 = por %p169, %p170
    %p172 = scmp.ne.s32.totalorder %s164, %s166
    %p173 = scmp.eq.s32.totalorder %s18, 3
    %p174 = por %p172, %p173
    %p175 = scmp.ne.s32.totalorder %s166, %s167
    %p176 = scmp.eq.s32.totalorder %s18, 0
    %p177 = por %p175, %p176
    %p178 = scmp.ne.s32.totalorder %s166, %s167
    %p179 = scmp.eq.s32.totalorder %s19, 3
    %p180 = por %p178, %p179
    %p182 = scmp.ne.s32.totalorder %s167, %s181
    %p183 = scmp.eq.s32.totalorder %s19, 0
    %p184 = por %p182, %p183
    %s185 = ssub.s32 %s20, %s32
    %s186 = ssub.s32 %s21, %s28
    %s187 = sor.u32 %s185, %s186
    %p188 = scmp.eq.s32.totalorder %s187, 0
    %s190 = sadd.s32 %s189, 1
    %s191 = scalar_select %p188, %s189, %s190
    %p194 = pneg %p188
    %p195 = scmp.eq.s32.totalorder %s13, 3
    %p196 = por %p194, %p195
    %p197 = scmp.ne.s32.totalorder %s189, %s192
    %p198 = scmp.eq.s32.totalorder %s13, 0
    %p199 = por %p197, %p198
    %p200 = scmp.ne.s32.totalorder %s189, %s192
    %p201 = scmp.eq.s32.totalorder %s18, 3
    %p202 = por %p200, %p201
    %p203 = scmp.ne.s32.totalorder %s192, %s193
    %p204 = scmp.eq.s32.totalorder %s18, 0
    %p205 = por %p203, %p204
    %p206 = scmp.ne.s32.totalorder %s192, %s193
    %p207 = scmp.eq.s32.totalorder %s19, 3
    %p208 = por %p206, %p207
    %p210 = scmp.ne.s32.totalorder %s193, %s209
    %p211 = scmp.eq.s32.totalorder %s19, 0
    %p212 = por %p210, %p211
    %p213 = scmp.le.s32.totalorder 1, %s13
    %p214 = scmp.lt.s32.totalorder %s13, 5
    %p215 = pnand %p213, %p214
    %p216 = pneg %p215
    // Predicated region
    $region9: #{inverted_block_forward.1} parent=5 // pred_check
      _
    $region10: #{inverted_block_forward.1} parent=5 // pred_check_branch
      %218 = sbr.rel (%p215) target = $region12
    $region11: #{inverted_block_forward.1} parent=5 // pred_region
      %s219 = ssub.s32 %s13, 1
      // Predicated region
      $region13: #{inverted_block_forward.1} parent=11 // pred_check
        %p220 = pneg %p72
      $region14: #{inverted_block_forward.1} parent=11 // pred_check_branch
        %222 = sbr.rel (%p220) target = $region16
      $region15: #{inverted_block_forward.1} parent=11 // pred_region
        _
      $region16: #{inverted_block_forward.1} parent=11 // pred_fallthru
        _
      // Predicated region
      $region17: #{inverted_block_forward.1} parent=11 // pred_check
        %p223 = pneg %p93
      $region18: #{inverted_block_forward.1} parent=11 // pred_check_branch
        %225 = sbr.rel (%p223) target = $region20
      $region19: #{inverted_block_forward.1} parent=11 // pred_region
        _
      $region20: #{inverted_block_forward.1} parent=11 // pred_fallthru
        _
      // Predicated region
      $region21: #{inverted_block_forward.1} parent=11 // pred_check
        %p226 = pneg %p114
      $region22: #{inverted_block_forward.1} parent=11 // pred_check_branch
        %228 = sbr.rel (%p226) target = $region24
      $region23: #{inverted_block_forward.1} parent=11 // pred_region
        _
      $region24: #{inverted_block_forward.1} parent=11 // pred_fallthru
        _
      // Predicated region
      $region25: #{inverted_block_forward.1} parent=11 // pred_check
        %p229 = pneg %p135
      $region26: #{inverted_block_forward.1} parent=11 // pred_check_branch
        %231 = sbr.rel (%p229) target = $region28
      $region27: #{inverted_block_forward.1} parent=11 // pred_region
        _
      $region28: #{inverted_block_forward.1} parent=11 // pred_fallthru
        _
      // Predicated region
      $region29: #{inverted_block_forward.1} parent=11 // pred_check
        %p232 = pneg %p156
      $region30: #{inverted_block_forward.1} parent=11 // pred_check_branch
        %234 = sbr.rel (%p232) target = $region32
      $region31: #{inverted_block_forward.1} parent=11 // pred_region
        _
      $region32: #{inverted_block_forward.1} parent=11 // pred_fallthru
        _
      // Predicated region
      $region33: #{inverted_block_forward.1} parent=11 // pred_check
        %p235 = pneg %p177
      $region34: #{inverted_block_forward.1} parent=11 // pred_check_branch
        %237 = sbr.rel (%p235) target = $region36
      $region35: #{inverted_block_forward.1} parent=11 // pred_region
        _
      $region36: #{inverted_block_forward.1} parent=11 // pred_fallthru
        _
    $region12: #{inverted_block_forward.1} parent=5 // pred_fallthru
      _
    %p238 = scmp.lt.s32.totalorder %s13, 4
    // Predicated region
    $region37: #{inverted_block_forward.1} parent=5 // pred_check
      %p239 = pneg %p238
    $region38: #{inverted_block_forward.1} parent=5 // pred_check_branch
      %241 = sbr.rel (%p239) target = $region40
    $region39: #{inverted_block_forward.1} parent=5 // pred_region
      // Predicated region
      $region41: #{inverted_block_forward.1} parent=39 // pred_check
        %p242 = pneg %p45
      $region42: #{inverted_block_forward.1} parent=39 // pred_check_branch
        %244 = sbr.rel (%p242) target = $region44
      $region43: #{inverted_block_forward.1} parent=39 // pred_region
        %p245 = scmp.lt.s32.totalorder %s20, 1
        %s246 = scalar_select %p245, %s20, 1
        %s247 = smul.addr %s246, 32
        %s248 = smul.addr %s247, 8
        %s249 = scalar_lea.vmem %s0, %s248
      $region44: #{inverted_block_forward.1} parent=39 // pred_fallthru
        _
    $region40: #{inverted_block_forward.1} parent=5 // pred_fallthru
      _
    %p250 = scmp.le.s32.totalorder 1, %s13
    %p251 = scmp.lt.s32.totalorder %s13, 5
    %p252 = pnand %p250, %p251
    %p253 = pneg %p252
    // Predicated region
    $region45: #{inverted_block_forward.1} parent=5 // pred_check
      _
    $region46: #{inverted_block_forward.1} parent=5 // pred_check_branch
      %255 = sbr.rel (%p252) target = $region48
    $region47: #{inverted_block_forward.1} parent=5 // pred_region
      %s256 = ssub.s32 %s13, 1
      %p257 = scmp.lt.s32.totalorder %s22, 1
      %s258 = scalar_select %p257, %s22, 1
      %s259 = smul.addr %s258, 32
      %s260 = smul.addr %s259, 8
      %s261 = scalar_lea.vmem %s0, %s260
      %p262 = pneg %p51
      %p263 = pneg %p48
      %p264 = pneg %p72
      %p265 = pneg %p69
      %p266 = pneg %p93
      %p267 = pneg %p90
      %p268 = pneg %p114
      %p269 = pneg %p111
      %p270 = pneg %p135
      %p271 = pneg %p132
      %p272 = pneg %p156
      %p273 = pneg %p153
      %p274 = pneg %p177
      %p275 = pneg %p174
      %p276 = pneg %p205
      %p277 = pneg %p202
      %s278 = smul.u32 8, %s23
      %p279 = scmp.lt.s32.totalorder %s22, 1
      %s280 = scalar_select %p279, %s22, 1
      %p281 = scmp.lt.s32.totalorder %s278, 15
      %s282 = scalar_select %p281, %s278, 15
      %s283 = smul.addr %s282, 2
      %s284 = smul.addr %s280, 32
      %s285 = sadd.s32 %s283, %s284
      %s286 = smul.addr %s285, 8
      %s287 = scalar_lea.vmem %s7, %s286
      %p288 = scmp.lt.s32.totalorder %s22, 1
      %s289 = scalar_select %p288, %s22, 1
      %s290 = smul.addr %s289, 32
      %s291 = smul.addr %s290, 8
      %s292 = scalar_lea.vmem %s0, %s291
      %s293 = smul.u32 8, %s23
      %p294 = scmp.lt.s32.totalorder %s22, 1
      %s295 = scalar_select %p294, %s22, 1
      %p296 = scmp.lt.s32.totalorder %s293, 15
      %s297 = scalar_select %p296, %s293, 15
      %s298 = smul.addr %s297, 2
      %s299 = smul.addr %s295, 32
      %s300 = sadd.s32 %s298, %s299
      %s301 = smul.addr %s300, 8
      %s302 = scalar_lea.vmem %s7, %s301
      %s303 = smul.u32 8, %s23
      %s304 = smul.u32 %s23, 8
      %s305 = ssub.s32 %s304, 1
      %vm306 = vcmask 57344
      %307 = vst.msk [vmem:[#allocation2] sm:$0x1] %vm306, 0.0
      %308 = vst.msk [vmem:[#allocation2 + $0x18] sm:$0x1] %vm306, 0.0
      %309 = vst.msk [vmem:[#allocation2 + $0x30] sm:$0x1] %vm306, 0.0
      %310 = vst.msk [vmem:[#allocation2 + $0x48] sm:$0x1] %vm306, 0.0
      %311 = vst.msk [vmem:[#allocation2 + $0x60] sm:$0x1] %vm306, 0.0
      %312 = vst.msk [vmem:[#allocation2 + $0x78] sm:$0x1] %vm306, 0.0
      %313 = vst.msk [vmem:[#allocation2 + $0x90] sm:$0x1] %vm306, 0.0
      %314 = vst.msk [vmem:[#allocation2 + $0xa8] sm:$0x1] %vm306, 0.0
      %315 = vst.msk [vmem:[#allocation2 + $0xc0] sm:$0x1] %vm306, 0.0
      %316 = vst.msk [vmem:[#allocation2 + $0xd8] sm:$0x1] %vm306, 0.0
      %317 = vst.msk [vmem:[#allocation2 + $0x11] sm:$0x1] %vm306, 0.0
      %318 = vst.msk [vmem:[#allocation2 + $0x29] sm:$0x1] %vm306, 0.0
      %319 = vst.msk [vmem:[#allocation2 + $0x41] sm:$0x1] %vm306, 0.0
      %320 = vst.msk [vmem:[#allocation2 + $0x59] sm:$0x1] %vm306, 0.0
      %321 = vst.msk [vmem:[#allocation2 + $0x71] sm:$0x1] %vm306, 0.0
      %322 = vst.msk [vmem:[#allocation2 + $0x89] sm:$0x1] %vm306, 0.0
      %323 = vst.msk [vmem:[#allocation2 + $0xa1] sm:$0x1] %vm306, 0.0
      %324 = vst.msk [vmem:[#allocation2 + $0xb9] sm:$0x1] %vm306, 0.0
      %325 = vst.msk [vmem:[#allocation2 + $0xd1] sm:$0x1] %vm306, 0.0
      %326 = vst.msk [vmem:[#allocation2 + $0xe9] sm:$0x1] %vm306, 0.0
      %v327 = vld [vmem:[%s1] sm:$0xf]
      %v328 = vld [vmem:[%s2] sm:$0x1]
      loop: start=0, step=1, limit=10
      $region49: #{inverted_block_forward.1} parent=47 // loop_pre_header
        _
      $region50: #{inverted_block_forward.1} parent=47 // loop_header
        %s330 = sphi 0, %s334
        %p331 = scmp.ge.s32.totalorder %s330, 10
      $region51: #{inverted_block_forward.1} parent=47 // loop_header_branch
        %333 = sbr.rel (%p331) target = $region55
      $region52: #{inverted_block_forward.1} parent=47 // loop_body
        %s335 = sadd.s32 %s305, %s330
        %p336 = scmp.ge.s32.totalorder %s335, 0
        %p337 = scmp.lt.s32.totalorder %s335, 16
        %p338 = pnand %p336, %p337
        %p339 = pneg %p338
        %p340 = scmp.gt.s32.totalorder %s335, 0
        %s341 = scalar_select %p340, %s335, 0
        %p342 = scmp.lt.s32.totalorder %s341, 15
        %s343 = scalar_select %p342, %s341, 15
        %s344 = smul.u32 %s343, 16
        %s345 = scalar_lea.vmem %s292, %s344
        %v346 = vld [vmem:[%s345] sm:$0xff]
        %v347 = vld [vmem:[%s345 + $0x8] sm:$0xff]
        %v349 = vlaneseq
        %v350 = vshrl.u32 %v349, 7
        %v351 = vsub.s32 0, %v350
        %v352 = vrot.slane %v328, %v351
        %vm354 = vcmask 31744
        %v356 = vsel %vm354, %v346, 0
        %v359 = vsel %vm354, %v347, 0
        %vm361 = vcmask 1043456
        %v363 = vsel %vm361, %v327, 0
        %365 = vmatprep.subr.mxu0 0.0
        %366 = vmatpush1.msra.mxu0 0.0
        %367 = vmatprep.subr.mxu0 0.0
        %368 = vmatpush1.msra.mxu0 0.0
        %369 = vmatprep.subr.mxu0 0.0
        %370 = vmatpush1.msra.mxu0 0.0
        %371 = vmatprep.subr.mxu0 0.0
        %372 = vmatpush1.msra.mxu0 0.0
        %373 = vmatprep.subr.mxu0 0.0
        %374 = vmatpush1.msra.mxu0 0.0
        %375 = vmatprep.subr.mxu0 0.0
        %376 = vmatpush1.msra.mxu0 0.0
        %377 = vmatprep.subr.mxu0 0.0
        %378 = vmatpush1.msra.mxu0 0.0
        %379 = vmatprep.subr.mxu0 0.0
        %380 = vmatpush1.msra.mxu0 0.0
        %381 = vmatprep.subr.mxu0 0.0
        %382 = vmatpush1.msra.mxu0 0.0
        %383 = vmatprep.subr.mxu0 0.0
        %384 = vmatpush1.msra.mxu0 0.0
        %385 = vmatprep.subr.mxu0 0.0
        %386 = vmatpush1.msra.mxu0 0.0
        %387 = vmatprep.subr.mxu0 0.0
        %388 = vmatpush1.msra.mxu0 0.0
        %389 = vmatprep.subr.mxu0 0.0
        %390 = vmatpush1.msra.mxu0 0.0
        %391 = vmatprep.subr.mxu0 0.0
        %392 = vmatpush1.msra.mxu0 0.0
        %393 = vmatprep.subr.mxu0 0.0
        %394 = vmatpush1.msra.mxu0 0.0
        %395 = vmatprep.subr.mxu0 0.0
        %396 = vmatpush1.msra.mxu0 %v363
        %397 = vmatprep.subr.mxu0 0.0
        %398 = vmatpush2.msra.mxu0 0.0
        %399 = vmatprep.subr.mxu0 0.0
        %400 = vmatpush2.msra.mxu0 0.0
        %401 = vmatprep.subr.mxu0 0.0
        %402 = vmatpush2.msra.mxu0 0.0
        %403 = vmatprep.subr.mxu0 0.0
        %404 = vmatpush2.msra.mxu0 0.0
        %405 = vmatprep.subr.mxu0 0.0
        %406 = vmatpush2.msra.mxu0 0.0
        %407 = vmatprep.subr.mxu0 0.0
        %408 = vmatpush2.msra.mxu0 0.0
        %409 = vmatprep.subr.mxu0 0.0
        %410 = vmatpush2.msra.mxu0 0.0
        %411 = vmatprep.subr.mxu0 0.0
        %412 = vmatpush2.msra.mxu0 0.0
        %413 = vmatprep.subr.mxu0 0.0
        %414 = vmatpush2.msra.mxu0 0.0
        %415 = vmatprep.subr.mxu0 0.0
        %416 = vmatpush2.msra.mxu0 0.0
        %417 = vmatprep.subr.mxu0 0.0
        %418 = vmatpush2.msra.mxu0 0.0
        %419 = vmatprep.subr.mxu0 0.0
        %420 = vmatpush2.msra.mxu0 0.0
        %421 = vmatprep.subr.mxu0 0.0
        %422 = vmatpush2.msra.mxu0 0.0
        %423 = vmatprep.subr.mxu0 0.0
        %424 = vmatpush2.msra.mxu0 0.0
        %425 = vmatprep.subr.mxu0 0.0
        %426 = vmatpush2.msra.mxu0 0.0
        %427 = vmatprep.subr.mxu0 0.0
        %428 = vmatpush2.msra.mxu0 0.0
        %429 = vmatprep.mubr.f32.mxu0 0.0
        %430 = vmatmul.mubr.f32.gmra.mxu0 %v356
        %v431 = vpop.f32.mrf.mxu0
        %v432 = vadd.f32 %v352, %v431
        %v433 = vpop.f32.mrf.mxu0
        %434 = vmatprep.mubr.f32.mxu0 0.0
        %435 = vmatmul.mubr.f32.gmra.mxu0 %v359
        %v436 = vpop.f32.mrf.mxu0
        %v437 = vadd.f32 %v352, %v436
        %v438 = vpop.f32.mrf.mxu0
        %439 = vdwg.mxu0
        %v440 = vmax.f32 %v432, 0.0
        %v441 = vmax.f32 %v437, 0.0
        %s442 = scalar_select %p339, 1, 0
        %v443 = vstv %s442
        %vm444 = vcmp.eq.s32.totalorder %v443, 1
        %v445 = vsel %vm444, %v440, 0.0
        %v446 = vsel %vm444, %v441, 0.0
        %s447 = smul.u32 %s330, 24
        %s448 = scalar_lea.vmem [#allocation2], %s447
        %vm449 = vcmask 64512
        %450 = vst.msk [vmem:[%s448 + $0x1] sm:$0xff] %vm449, %v445
        %451 = vst.msk [vmem:[%s448 + $0x9] sm:$0xff] %vm449, %v446
      $region53: #{inverted_block_forward.1} parent=47 // loop_footer
        %s334 = sadd.s32 1, %s330
      $region54: #{inverted_block_forward.1} parent=47 // loop_footer_branch
        %329 = sbr.rel target = $region50
      $region55: #{inverted_block_forward.1} parent=47 // loop_exit
        _
      %v452 = vld [vmem:[%s3] sm:$0x7]
      %v453 = vld [vmem:[%s3 + $0x4] sm:$0x7]
      %v454 = vld [vmem:[%s3 + $0x8] sm:$0x7]
      %v455 = vld [vmem:[%s4] sm:$0x1]
      %v456 = vld [vmem:[#allocation2] sm:$0xff]
      %v457 = vld [vmem:[#allocation2 + $0x8] sm:$0xff]
      %v458 = vld [vmem:[#allocation2 + $0x18] sm:$0xff]
      %v459 = vld [vmem:[#allocation2 + $0x20] sm:$0xff]
      %v460 = vld [vmem:[#allocation2 + $0x30] sm:$0xff]
      %v461 = vld [vmem:[#allocation2 + $0x38] sm:$0xff]
      %v462 = vld [vmem:[#allocation2 + $0x48] sm:$0xff]
      %v463 = vld [vmem:[#allocation2 + $0x50] sm:$0xff]
      %v464 = vld [vmem:[#allocation2 + $0x60] sm:$0xff]
      %v465 = vld [vmem:[#allocation2 + $0x68] sm:$0xff]
      %v466 = vld [vmem:[#allocation2 + $0x78] sm:$0xff]
      %v467 = vld [vmem:[#allocation2 + $0x80] sm:$0xff]
      %v468 = vld [vmem:[#allocation2 + $0x90] sm:$0xff]
      %v469 = vld [vmem:[#allocation2 + $0x98] sm:$0xff]
      %v470 = vld [vmem:[#allocation2 + $0xa8] sm:$0xff]
      %v471 = vld [vmem:[#allocation2 + $0xb0] sm:$0xff]
      %v472 = vlaneseq
      %v473 = vshrl.u32 %v472, 7
      %v474 = vsub.s32 0, %v473
      %v475 = vrot.slane %v452, %v474
      %v476 = vmul.f32 %v456, %v475
      %v477 = vmul.f32 %v457, %v475
      %v478 = vmul.f32 %v458, %v475
      %v479 = vmul.f32 %v459, %v475
      %v480 = vmul.f32 %v460, %v475
      %v481 = vmul.f32 %v461, %v475
      %v482 = vmul.f32 %v462, %v475
      %v483 = vmul.f32 %v463, %v475
      %v484 = vmul.f32 %v464, %v475
      %v485 = vmul.f32 %v465, %v475
      %v486 = vmul.f32 %v466, %v475
      %v487 = vmul.f32 %v467, %v475
      %v488 = vmul.f32 %v468, %v475
      %v489 = vmul.f32 %v469, %v475
      %v490 = vmul.f32 %v470, %v475
      %v491 = vmul.f32 %v471, %v475
      %v492 = vadd.f32 %v476, 0.0
      %v493 = vadd.f32 %v477, 0.0
      %v494 = vadd.f32 %v478, 0.0
      %v495 = vadd.f32 %v479, 0.0
      %v496 = vadd.f32 %v480, 0.0
      %v497 = vadd.f32 %v481, 0.0
      %v498 = vadd.f32 %v482, 0.0
      %v499 = vadd.f32 %v483, 0.0
      %v500 = vadd.f32 %v484, 0.0
      %v501 = vadd.f32 %v485, 0.0
      %v502 = vadd.f32 %v486, 0.0
      %v503 = vadd.f32 %v487, 0.0
      %v504 = vadd.f32 %v488, 0.0
      %v505 = vadd.f32 %v489, 0.0
      %v506 = vadd.f32 %v490, 0.0
      %v507 = vadd.f32 %v491, 0.0
      %v508 = vld [vmem:[#allocation2 + $0x1] sm:$0xff]
      %v509 = vld [vmem:[#allocation2 + $0x9] sm:$0xff]
      %v510 = vld [vmem:[#allocation2 + $0x19] sm:$0xff]
      %v511 = vld [vmem:[#allocation2 + $0x21] sm:$0xff]
      %v512 = vld [vmem:[#allocation2 + $0x31] sm:$0xff]
      %v513 = vld [vmem:[#allocation2 + $0x39] sm:$0xff]
      %v514 = vld [vmem:[#allocation2 + $0x49] sm:$0xff]
      %v515 = vld [vmem:[#allocation2 + $0x51] sm:$0xff]
      %v516 = vld [vmem:[#allocation2 + $0x61] sm:$0xff]
      %v517 = vld [vmem:[#allocation2 + $0x69] sm:$0xff]
      %v518 = vld [vmem:[#allocation2 + $0x79] sm:$0xff]
      %v519 = vld [vmem:[#allocation2 + $0x81] sm:$0xff]
      %v520 = vld [vmem:[#allocation2 + $0x91] sm:$0xff]
      %v521 = vld [vmem:[#allocation2 + $0x99] sm:$0xff]
      %v522 = vld [vmem:[#allocation2 + $0xa9] sm:$0xff]
      %v523 = vld [vmem:[#allocation2 + $0xb1] sm:$0xff]
      %v524 = vlaneseq
      %v525 = vshrl.u32 %v524, 7
      %v526 = vsub.s32 1, %v525
      %v527 = vrot.slane %v452, %v526
      %v528 = vmul.f32 %v508, %v527
      %v529 = vmul.f32 %v509, %v527
      %v530 = vmul.f32 %v510, %v527
      %v531 = vmul.f32 %v511, %v527
      %v532 = vmul.f32 %v512, %v527
      %v533 = vmul.f32 %v513, %v527
      %v534 = vmul.f32 %v514, %v527
      %v535 = vmul.f32 %v515, %v527
      %v536 = vmul.f32 %v516, %v527
      %v537 = vmul.f32 %v517, %v527
      %v538 = vmul.f32 %v518, %v527
      %v539 = vmul.f32 %v519, %v527
      %v540 = vmul.f32 %v520, %v527
      %v541 = vmul.f32 %v521, %v527
      %v542 = vmul.f32 %v522, %v527
      %v543 = vmul.f32 %v523, %v527
      %v544 = vadd.f32 %v492, %v528
      %v545 = vadd.f32 %v493, %v529
      %v546 = vadd.f32 %v494, %v530
      %v547 = vadd.f32 %v495, %v531
      %v548 = vadd.f32 %v496, %v532
      %v549 = vadd.f32 %v497, %v533
      %v550 = vadd.f32 %v498, %v534
      %v551 = vadd.f32 %v499, %v535
      %v552 = vadd.f32 %v500, %v536
      %v553 = vadd.f32 %v501, %v537
      %v554 = vadd.f32 %v502, %v538
      %v555 = vadd.f32 %v503, %v539
      %v556 = vadd.f32 %v504, %v540
      %v557 = vadd.f32 %v505, %v541
      %v558 = vadd.f32 %v506, %v542
      %v559 = vadd.f32 %v507, %v543
      %v560 = vld [vmem:[#allocation2 + $0x2] sm:$0xff]
      %v561 = vld [vmem:[#allocation2 + $0xa] sm:$0xff]
      %v562 = vld [vmem:[#allocation2 + $0x1a] sm:$0xff]
      %v563 = vld [vmem:[#allocation2 + $0x22] sm:$0xff]
      %v564 = vld [vmem:[#allocation2 + $0x32] sm:$0xff]
      %v565 = vld [vmem:[#allocation2 + $0x3a] sm:$0xff]
      %v566 = vld [vmem:[#allocation2 + $0x4a] sm:$0xff]
      %v567 = vld [vmem:[#allocation2 + $0x52] sm:$0xff]
      %v568 = vld [vmem:[#allocation2 + $0x62] sm:$0xff]
      %v569 = vld [vmem:[#allocation2 + $0x6a] sm:$0xff]
      %v570 = vld [vmem:[#allocation2 + $0x7a] sm:$0xff]
      %v571 = vld [vmem:[#allocation2 + $0x82] sm:$0xff]
      %v572 = vld [vmem:[#allocation2 + $0x92] sm:$0xff]
      %v573 = vld [vmem:[#allocation2 + $0x9a] sm:$0xff]
      %v574 = vld [vmem:[#allocation2 + $0xaa] sm:$0xff]
      %v575 = vld [vmem:[#allocation2 + $0xb2] sm:$0xff]
      %v576 = vlaneseq
      %v577 = vshrl.u32 %v576, 7
      %v578 = vsub.s32 2, %v577
      %v579 = vrot.slane %v452, %v578
      %v580 = vmul.f32 %v560, %v579
      %v581 = vmul.f32 %v561, %v579
      %v582 = vmul.f32 %v562, %v579
      %v583 = vmul.f32 %v563, %v579
      %v584 = vmul.f32 %v564, %v579
      %v585 = vmul.f32 %v565, %v579
      %v586 = vmul.f32 %v566, %v579
      %v587 = vmul.f32 %v567, %v579
      %v588 = vmul.f32 %v568, %v579
      %v589 = vmul.f32 %v569, %v579
      %v590 = vmul.f32 %v570, %v579
      %v591 = vmul.f32 %v571, %v579
      %v592 = vmul.f32 %v572, %v579
      %v593 = vmul.f32 %v573, %v579
      %v594 = vmul.f32 %v574, %v579
      %v595 = vmul.f32 %v575, %v579
      %v596 = vadd.f32 %v544, %v580
      %v597 = vadd.f32 %v545, %v581
      %v598 = vadd.f32 %v546, %v582
      %v599 = vadd.f32 %v547, %v583
      %v600 = vadd.f32 %v548, %v584
      %v601 = vadd.f32 %v549, %v585
      %v602 = vadd.f32 %v550, %v586
      %v603 = vadd.f32 %v551, %v587
      %v604 = vadd.f32 %v552, %v588
      %v605 = vadd.f32 %v553, %v589
      %v606 = vadd.f32 %v554, %v590
      %v607 = vadd.f32 %v555, %v591
      %v608 = vadd.f32 %v556, %v592
      %v609 = vadd.f32 %v557, %v593
      %v610 = vadd.f32 %v558, %v594
      %v611 = vadd.f32 %v559, %v595
      %s612 = scalar_lea.vmem [#allocation2], 24
      %v613 = vld [vmem:[%s612] sm:$0xff]
      %v614 = vld [vmem:[%s612 + $0x8] sm:$0xff]
      %v615 = vld [vmem:[%s612 + $0x18] sm:$0xff]
      %v616 = vld [vmem:[%s612 + $0x20] sm:$0xff]
      %v617 = vld [vmem:[%s612 + $0x30] sm:$0xff]
      %v618 = vld [vmem:[%s612 + $0x38] sm:$0xff]
      %v619 = vld [vmem:[%s612 + $0x48] sm:$0xff]
      %v620 = vld [vmem:[%s612 + $0x50] sm:$0xff]
      %v621 = vld [vmem:[%s612 + $0x60] sm:$0xff]
      %v622 = vld [vmem:[%s612 + $0x68] sm:$0xff]
      %v623 = vld [vmem:[%s612 + $0x78] sm:$0xff]
      %v624 = vld [vmem:[%s612 + $0x80] sm:$0xff]
      %v625 = vld [vmem:[%s612 + $0x90] sm:$0xff]
      %v626 = vld [vmem:[%s612 + $0x98] sm:$0xff]
      %v627 = vld [vmem:[%s612 + $0xa8] sm:$0xff]
      %v628 = vld [vmem:[%s612 + $0xb0] sm:$0xff]
      %v629 = vlaneseq
      %v630 = vshrl.u32 %v629, 7
      %v631 = vsub.s32 0, %v630
      %v632 = vrot.slane %v453, %v631
      %v633 = vmul.f32 %v613, %v632
      %v634 = vmul.f32 %v614, %v632
      %v635 = vmul.f32 %v615, %v632
      %v636 = vmul.f32 %v616, %v632
      %v637 = vmul.f32 %v617, %v632
      %v638 = vmul.f32 %v618, %v632
      %v639 = vmul.f32 %v619, %v632
      %v640 = vmul.f32 %v620, %v632
      %v641 = vmul.f32 %v621, %v632
      %v642 = vmul.f32 %v622, %v632
      %v643 = vmul.f32 %v623, %v632
      %v644 = vmul.f32 %v624, %v632
      %v645 = vmul.f32 %v625, %v632
      %v646 = vmul.f32 %v626, %v632
      %v647 = vmul.f32 %v627, %v632
      %v648 = vmul.f32 %v628, %v632
      %v649 = vadd.f32 %v596, %v633
      %v650 = vadd.f32 %v597, %v634
      %v651 = vadd.f32 %v598, %v635
      %v652 = vadd.f32 %v599, %v636
      %v653 = vadd.f32 %v600, %v637
      %v654 = vadd.f32 %v601, %v638
      %v655 = vadd.f32 %v602, %v639
      %v656 = vadd.f32 %v603, %v640
      %v657 = vadd.f32 %v604, %v641
      %v658 = vadd.f32 %v605, %v642
      %v659 = vadd.f32 %v606, %v643
      %v660 = vadd.f32 %v607, %v644
      %v661 = vadd.f32 %v608, %v645
      %v662 = vadd.f32 %v609, %v646
      %v663 = vadd.f32 %v610, %v647
      %v664 = vadd.f32 %v611, %v648
      %v665 = vld [vmem:[%s612 + $0x1] sm:$0xff]
      %v666 = vld [vmem:[%s612 + $0x9] sm:$0xff]
      %v667 = vld [vmem:[%s612 + $0x19] sm:$0xff]
      %v668 = vld [vmem:[%s612 + $0x21] sm:$0xff]
      %v669 = vld [vmem:[%s612 + $0x31] sm:$0xff]
      %v670 = vld [vmem:[%s612 + $0x39] sm:$0xff]
      %v671 = vld [vmem:[%s612 + $0x49] sm:$0xff]
      %v672 = vld [vmem:[%s612 + $0x51] sm:$0xff]
      %v673 = vld [vmem:[%s612 + $0x61] sm:$0xff]
      %v674 = vld [vmem:[%s612 + $0x69] sm:$0xff]
      %v675 = vld [vmem:[%s612 + $0x79] sm:$0xff]
      %v676 = vld [vmem:[%s612 + $0x81] sm:$0xff]
      %v677 = vld [vmem:[%s612 + $0x91] sm:$0xff]
      %v678 = vld [vmem:[%s612 + $0x99] sm:$0xff]
      %v679 = vld [vmem:[%s612 + $0xa9] sm:$0xff]
      %v680 = vld [vmem:[%s612 + $0xb1] sm:$0xff]
      %v681 = vlaneseq
      %v682 = vshrl.u32 %v681, 7
      %v683 = vsub.s32 1, %v682
      %v684 = vrot.slane %v453, %v683
      %v685 = vmul.f32 %v665, %v684
      %v686 = vmul.f32 %v666, %v684
      %v687 = vmul.f32 %v667, %v684
      %v688 = vmul.f32 %v668, %v684
      %v689 = vmul.f32 %v669, %v684
      %v690 = vmul.f32 %v670, %v684
      %v691 = vmul.f32 %v671, %v684
      %v692 = vmul.f32 %v672, %v684
      %v693 = vmul.f32 %v673, %v684
      %v694 = vmul.f32 %v674, %v684
      %v695 = vmul.f32 %v675, %v684
      %v696 = vmul.f32 %v676, %v684
      %v697 = vmul.f32 %v677, %v684
      %v698 = vmul.f32 %v678, %v684
      %v699 = vmul.f32 %v679, %v684
      %v700 = vmul.f32 %v680, %v684
      %v701 = vadd.f32 %v649, %v685
      %v702 = vadd.f32 %v650, %v686
      %v703 = vadd.f32 %v651, %v687
      %v704 = vadd.f32 %v652, %v688
      %v705 = vadd.f32 %v653, %v689
      %v706 = vadd.f32 %v654, %v690
      %v707 = vadd.f32 %v655, %v691
      %v708 = vadd.f32 %v656, %v692
      %v709 = vadd.f32 %v657, %v693
      %v710 = vadd.f32 %v658, %v694
      %v711 = vadd.f32 %v659, %v695
      %v712 = vadd.f32 %v660, %v696
      %v713 = vadd.f32 %v661, %v697
      %v714 = vadd.f32 %v662, %v698
      %v715 = vadd.f32 %v663, %v699
      %v716 = vadd.f32 %v664, %v700
      %v717 = vld [vmem:[%s612 + $0x2] sm:$0xff]
      %v718 = vld [vmem:[%s612 + $0xa] sm:$0xff]
      %v719 = vld [vmem:[%s612 + $0x1a] sm:$0xff]
      %v720 = vld [vmem:[%s612 + $0x22] sm:$0xff]
      %v721 = vld [vmem:[%s612 + $0x32] sm:$0xff]
      %v722 = vld [vmem:[%s612 + $0x3a] sm:$0xff]
      %v723 = vld [vmem:[%s612 + $0x4a] sm:$0xff]
      %v724 = vld [vmem:[%s612 + $0x52] sm:$0xff]
      %v725 = vld [vmem:[%s612 + $0x62] sm:$0xff]
      %v726 = vld [vmem:[%s612 + $0x6a] sm:$0xff]
      %v727 = vld [vmem:[%s612 + $0x7a] sm:$0xff]
      %v728 = vld [vmem:[%s612 + $0x82] sm:$0xff]
      %v729 = vld [vmem:[%s612 + $0x92] sm:$0xff]
      %v730 = vld [vmem:[%s612 + $0x9a] sm:$0xff]
      %v731 = vld [vmem:[%s612 + $0xaa] sm:$0xff]
      %v732 = vld [vmem:[%s612 + $0xb2] sm:$0xff]
      %v733 = vlaneseq
      %v734 = vshrl.u32 %v733, 7
      %v735 = vsub.s32 2, %v734
      %v736 = vrot.slane %v453, %v735
      %v737 = vmul.f32 %v717, %v736
      %v738 = vmul.f32 %v718, %v736
      %v739 = vmul.f32 %v719, %v736
      %v740 = vmul.f32 %v720, %v736
      %v741 = vmul.f32 %v721, %v736
      %v742 = vmul.f32 %v722, %v736
      %v743 = vmul.f32 %v723, %v736
      %v744 = vmul.f32 %v724, %v736
      %v745 = vmul.f32 %v725, %v736
      %v746 = vmul.f32 %v726, %v736
      %v747 = vmul.f32 %v727, %v736
      %v748 = vmul.f32 %v728, %v736
      %v749 = vmul.f32 %v729, %v736
      %v750 = vmul.f32 %v730, %v736
      %v751 = vmul.f32 %v731, %v736
      %v752 = vmul.f32 %v732, %v736
      %v753 = vadd.f32 %v701, %v737
      %v754 = vadd.f32 %v702, %v738
      %v755 = vadd.f32 %v703, %v739
      %v756 = vadd.f32 %v704, %v740
      %v757 = vadd.f32 %v705, %v741
      %v758 = vadd.f32 %v706, %v742
      %v759 = vadd.f32 %v707, %v743
      %v760 = vadd.f32 %v708, %v744
      %v761 = vadd.f32 %v709, %v745
      %v762 = vadd.f32 %v710, %v746
      %v763 = vadd.f32 %v711, %v747
      %v764 = vadd.f32 %v712, %v748
      %v765 = vadd.f32 %v713, %v749
      %v766 = vadd.f32 %v714, %v750
      %v767 = vadd.f32 %v715, %v751
      %v768 = vadd.f32 %v716, %v752
      %s769 = scalar_lea.vmem [#allocation2], 48
      %v770 = vld [vmem:[%s769] sm:$0xff]
      %v771 = vld [vmem:[%s769 + $0x8] sm:$0xff]
      %v772 = vld [vmem:[%s769 + $0x18] sm:$0xff]
      %v773 = vld [vmem:[%s769 + $0x20] sm:$0xff]
      %v774 = vld [vmem:[%s769 + $0x30] sm:$0xff]
      %v775 = vld [vmem:[%s769 + $0x38] sm:$0xff]
      %v776 = vld [vmem:[%s769 + $0x48] sm:$0xff]
      %v777 = vld [vmem:[%s769 + $0x50] sm:$0xff]
      %v778 = vld [vmem:[%s769 + $0x60] sm:$0xff]
      %v779 = vld [vmem:[%s769 + $0x68] sm:$0xff]
      %v780 = vld [vmem:[%s769 + $0x78] sm:$0xff]
      %v781 = vld [vmem:[%s769 + $0x80] sm:$0xff]
      %v782 = vld [vmem:[%s769 + $0x90] sm:$0xff]
      %v783 = vld [vmem:[%s769 + $0x98] sm:$0xff]
      %v784 = vld [vmem:[%s769 + $0xa8] sm:$0xff]
      %v785 = vld [vmem:[%s769 + $0xb0] sm:$0xff]
      %v786 = vlaneseq
      %v787 = vshrl.u32 %v786, 7
      %v788 = vsub.s32 0, %v787
      %v789 = vrot.slane %v454, %v788
      %v790 = vmul.f32 %v770, %v789
      %v791 = vmul.f32 %v771, %v789
      %v792 = vmul.f32 %v772, %v789
      %v793 = vmul.f32 %v773, %v789
      %v794 = vmul.f32 %v774, %v789
      %v795 = vmul.f32 %v775, %v789
      %v796 = vmul.f32 %v776, %v789
      %v797 = vmul.f32 %v777, %v789
      %v798 = vmul.f32 %v778, %v789
      %v799 = vmul.f32 %v779, %v789
      %v800 = vmul.f32 %v780, %v789
      %v801 = vmul.f32 %v781, %v789
      %v802 = vmul.f32 %v782, %v789
      %v803 = vmul.f32 %v783, %v789
      %v804 = vmul.f32 %v784, %v789
      %v805 = vmul.f32 %v785, %v789
      %v806 = vadd.f32 %v753, %v790
      %v807 = vadd.f32 %v754, %v791
      %v808 = vadd.f32 %v755, %v792
      %v809 = vadd.f32 %v756, %v793
      %v810 = vadd.f32 %v757, %v794
      %v811 = vadd.f32 %v758, %v795
      %v812 = vadd.f32 %v759, %v796
      %v813 = vadd.f32 %v760, %v797
      %v814 = vadd.f32 %v761, %v798
      %v815 = vadd.f32 %v762, %v799
      %v816 = vadd.f32 %v763, %v800
      %v817 = vadd.f32 %v764, %v801
      %v818 = vadd.f32 %v765, %v802
      %v819 = vadd.f32 %v766, %v803
      %v820 = vadd.f32 %v767, %v804
      %v821 = vadd.f32 %v768, %v805
      %v822 = vld [vmem:[%s769 + $0x1] sm:$0xff]
      %v823 = vld [vmem:[%s769 + $0x9] sm:$0xff]
      %v824 = vld [vmem:[%s769 + $0x19] sm:$0xff]
      %v825 = vld [vmem:[%s769 + $0x21] sm:$0xff]
      %v826 = vld [vmem:[%s769 + $0x31] sm:$0xff]
      %v827 = vld [vmem:[%s769 + $0x39] sm:$0xff]
      %v828 = vld [vmem:[%s769 + $0x49] sm:$0xff]
      %v829 = vld [vmem:[%s769 + $0x51] sm:$0xff]
      %v830 = vld [vmem:[%s769 + $0x61] sm:$0xff]
      %v831 = vld [vmem:[%s769 + $0x69] sm:$0xff]
      %v832 = vld [vmem:[%s769 + $0x79] sm:$0xff]
      %v833 = vld [vmem:[%s769 + $0x81] sm:$0xff]
      %v834 = vld [vmem:[%s769 + $0x91] sm:$0xff]
      %v835 = vld [vmem:[%s769 + $0x99] sm:$0xff]
      %v836 = vld [vmem:[%s769 + $0xa9] sm:$0xff]
      %v837 = vld [vmem:[%s769 + $0xb1] sm:$0xff]
      %v838 = vlaneseq
      %v839 = vshrl.u32 %v838, 7
      %v840 = vsub.s32 1, %v839
      %v841 = vrot.slane %v454, %v840
      %v842 = vmul.f32 %v822, %v841
      %v843 = vmul.f32 %v823, %v841
      %v844 = vmul.f32 %v824, %v841
      %v845 = vmul.f32 %v825, %v841
      %v846 = vmul.f32 %v826, %v841
      %v847 = vmul.f32 %v827, %v841
      %v848 = vmul.f32 %v828, %v841
      %v849 = vmul.f32 %v829, %v841
      %v850 = vmul.f32 %v830, %v841
      %v851 = vmul.f32 %v831, %v841
      %v852 = vmul.f32 %v832, %v841
      %v853 = vmul.f32 %v833, %v841
      %v854 = vmul.f32 %v834, %v841
      %v855 = vmul.f32 %v835, %v841
      %v856 = vmul.f32 %v836, %v841
      %v857 = vmul.f32 %v837, %v841
      %v858 = vadd.f32 %v806, %v842
      %v859 = vadd.f32 %v807, %v843
      %v860 = vadd.f32 %v808, %v844
      %v861 = vadd.f32 %v809, %v845
      %v862 = vadd.f32 %v810, %v846
      %v863 = vadd.f32 %v811, %v847
      %v864 = vadd.f32 %v812, %v848
      %v865 = vadd.f32 %v813, %v849
      %v866 = vadd.f32 %v814, %v850
      %v867 = vadd.f32 %v815, %v851
      %v868 = vadd.f32 %v816, %v852
      %v869 = vadd.f32 %v817, %v853
      %v870 = vadd.f32 %v818, %v854
      %v871 = vadd.f32 %v819, %v855
      %v872 = vadd.f32 %v820, %v856
      %v873 = vadd.f32 %v821, %v857
      %v874 = vld [vmem:[%s769 + $0x2] sm:$0xff]
      %v875 = vld [vmem:[%s769 + $0xa] sm:$0xff]
      %v876 = vld [vmem:[%s769 + $0x1a] sm:$0xff]
      %v877 = vld [vmem:[%s769 + $0x22] sm:$0xff]
      %v878 = vld [vmem:[%s769 + $0x32] sm:$0xff]
      %v879 = vld [vmem:[%s769 + $0x3a] sm:$0xff]
      %v880 = vld [vmem:[%s769 + $0x4a] sm:$0xff]
      %v881 = vld [vmem:[%s769 + $0x52] sm:$0xff]
      %v882 = vld [vmem:[%s769 + $0x62] sm:$0xff]
      %v883 = vld [vmem:[%s769 + $0x6a] sm:$0xff]
      %v884 = vld [vmem:[%s769 + $0x7a] sm:$0xff]
      %v885 = vld [vmem:[%s769 + $0x82] sm:$0xff]
      %v886 = vld [vmem:[%s769 + $0x92] sm:$0xff]
      %v887 = vld [vmem:[%s769 + $0x9a] sm:$0xff]
      %v888 = vld [vmem:[%s769 + $0xaa] sm:$0xff]
      %v889 = vld [vmem:[%s769 + $0xb2] sm:$0xff]
      %v890 = vlaneseq
      %v891 = vshrl.u32 %v890, 7
      %v892 = vsub.s32 2, %v891
      %v893 = vrot.slane %v454, %v892
      %v894 = vmul.f32 %v874, %v893
      %v895 = vmul.f32 %v875, %v893
      %v896 = vmul.f32 %v876, %v893
      %v897 = vmul.f32 %v877, %v893
      %v898 = vmul.f32 %v878, %v893
      %v899 = vmul.f32 %v879, %v893
      %v900 = vmul.f32 %v880, %v893
      %v901 = vmul.f32 %v881, %v893
      %v902 = vmul.f32 %v882, %v893
      %v903 = vmul.f32 %v883, %v893
      %v904 = vmul.f32 %v884, %v893
      %v905 = vmul.f32 %v885, %v893
      %v906 = vmul.f32 %v886, %v893
      %v907 = vmul.f32 %v887, %v893
      %v908 = vmul.f32 %v888, %v893
      %v909 = vmul.f32 %v889, %v893
      %v910 = vadd.f32 %v858, %v894
      %v911 = vadd.f32 %v859, %v895
      %v912 = vadd.f32 %v860, %v896
      %v913 = vadd.f32 %v861, %v897
      %v914 = vadd.f32 %v862, %v898
      %v915 = vadd.f32 %v863, %v899
      %v916 = vadd.f32 %v864, %v900
      %v917 = vadd.f32 %v865, %v901
      %v918 = vadd.f32 %v866, %v902
      %v919 = vadd.f32 %v867, %v903
      %v920 = vadd.f32 %v868, %v904
      %v921 = vadd.f32 %v869, %v905
      %v922 = vadd.f32 %v870, %v906
      %v923 = vadd.f32 %v871, %v907
      %v924 = vadd.f32 %v872, %v908
      %v925 = vadd.f32 %v873, %v909
      %v927 = vlaneseq
      %v928 = vshrl.u32 %v927, 7
      %v929 = vsub.s32 0, %v928
      %v930 = vrot.slane %v455, %v929
      %v932 = vadd.f32 %v910, %v930
      %v933 = vadd.f32 %v911, %v930
      %v934 = vadd.f32 %v912, %v930
      %v935 = vadd.f32 %v913, %v930
      %v936 = vadd.f32 %v914, %v930
      %v937 = vadd.f32 %v915, %v930
      %v938 = vadd.f32 %v916, %v930
      %v939 = vadd.f32 %v917, %v930
      %v940 = vadd.f32 %v918, %v930
      %v941 = vadd.f32 %v919, %v930
      %v942 = vadd.f32 %v920, %v930
      %v943 = vadd.f32 %v921, %v930
      %v944 = vadd.f32 %v922, %v930
      %v945 = vadd.f32 %v923, %v930
      %v946 = vadd.f32 %v924, %v930
      %v947 = vadd.f32 %v925, %v930
      %v948 = vmax.f32 %v932, 0.0
      %v949 = vmax.f32 %v933, 0.0
      %v950 = vmax.f32 %v934, 0.0
      %v951 = vmax.f32 %v935, 0.0
      %v952 = vmax.f32 %v936, 0.0
      %v953 = vmax.f32 %v937, 0.0
      %v954 = vmax.f32 %v938, 0.0
      %v955 = vmax.f32 %v939, 0.0
      %v956 = vmax.f32 %v940, 0.0
      %v957 = vmax.f32 %v941, 0.0
      %v958 = vmax.f32 %v942, 0.0
      %v959 = vmax.f32 %v943, 0.0
      %v960 = vmax.f32 %v944, 0.0
      %v961 = vmax.f32 %v945, 0.0
      %v962 = vmax.f32 %v946, 0.0
      %v963 = vmax.f32 %v947, 0.0
      %v964 = vld [vmem:[%s5] sm:$0xff]
      %v965 = vld [vmem:[%s6] sm:$0x1]
      %v967 = vlaneseq
      %v968 = vshrl.u32 %v967, 7
      %v969 = vsub.s32 0, %v968
      %v970 = vrot.slane %v965, %v969
      %vm972 = vcmask 64512
      %v974 = vsel %vm972, %v948, 0
      %v977 = vsel %vm972, %v949, 0
      %v980 = vsel %vm972, %v950, 0
      %v983 = vsel %vm972, %v951, 0
      %v986 = vsel %vm972, %v952, 0
      %v989 = vsel %vm972, %v953, 0
      %v992 = vsel %vm972, %v954, 0
      %v995 = vsel %vm972, %v955, 0
      %v998 = vsel %vm972, %v956, 0
      %v1001 = vsel %vm972, %v957, 0
      %v1004 = vsel %vm972, %v958, 0
      %v1007 = vsel %vm972, %v959, 0
      %v1010 = vsel %vm972, %v960, 0
      %v1013 = vsel %vm972, %v961, 0
      %v1016 = vsel %vm972, %v962, 0
      %v1019 = vsel %vm972, %v963, 0
      %1021 = vmatprep.subr.mxu0 0.0
      %1022 = vmatpush1.msra.mxu0 0.0
      %1023 = vmatprep.subr.mxu0 0.0
      %1024 = vmatpush1.msra.mxu0 0.0
      %1025 = vmatprep.subr.mxu0 0.0
      %1026 = vmatpush1.msra.mxu0 0.0
      %1027 = vmatprep.subr.mxu0 0.0
      %1028 = vmatpush1.msra.mxu0 0.0
      %1029 = vmatprep.subr.mxu0 0.0
      %1030 = vmatpush1.msra.mxu0 0.0
      %1031 = vmatprep.subr.mxu0 0.0
      %1032 = vmatpush1.msra.mxu0 0.0
      %1033 = vmatprep.subr.mxu0 0.0
      %1034 = vmatpush1.msra.mxu0 0.0
      %1035 = vmatprep.subr.mxu0 0.0
      %1036 = vmatpush1.msra.mxu0 0.0
      %1037 = vmatprep.subr.mxu0 0.0
      %1038 = vmatpush1.msra.mxu0 0.0
      %1039 = vmatprep.subr.mxu0 0.0
      %1040 = vmatpush1.msra.mxu0 0.0
      %1041 = vmatprep.subr.mxu0 0.0
      %1042 = vmatpush1.msra.mxu0 0.0
      %1043 = vmatprep.subr.mxu0 0.0
      %1044 = vmatpush1.msra.mxu0 0.0
      %1045 = vmatprep.subr.mxu0 0.0
      %1046 = vmatpush1.msra.mxu0 0.0
      %1047 = vmatprep.subr.mxu0 0.0
      %1048 = vmatpush1.msra.mxu0 0.0
      %1049 = vmatprep.subr.mxu0 0.0
      %1050 = vmatpush1.msra.mxu0 0.0
      %1051 = vmatprep.subr.mxu0 0.0
      %1052 = vmatpush1.msra.mxu0 %v964
      %1053 = vmatprep.subr.mxu0 0.0
      %1054 = vmatpush2.msra.mxu0 0.0
      %1055 = vmatprep.subr.mxu0 0.0
      %1056 = vmatpush2.msra.mxu0 0.0
      %1057 = vmatprep.subr.mxu0 0.0
      %1058 = vmatpush2.msra.mxu0 0.0
      %1059 = vmatprep.subr.mxu0 0.0
      %1060 = vmatpush2.msra.mxu0 0.0
      %1061 = vmatprep.subr.mxu0 0.0
      %1062 = vmatpush2.msra.mxu0 0.0
      %1063 = vmatprep.subr.mxu0 0.0
      %1064 = vmatpush2.msra.mxu0 0.0
      %1065 = vmatprep.subr.mxu0 0.0
      %1066 = vmatpush2.msra.mxu0 0.0
      %1067 = vmatprep.subr.mxu0 0.0
      %1068 = vmatpush2.msra.mxu0 0.0
      %1069 = vmatprep.subr.mxu0 0.0
      %1070 = vmatpush2.msra.mxu0 0.0
      %1071 = vmatprep.subr.mxu0 0.0
      %1072 = vmatpush2.msra.mxu0 0.0
      %1073 = vmatprep.subr.mxu0 0.0
      %1074 = vmatpush2.msra.mxu0 0.0
      %1075 = vmatprep.subr.mxu0 0.0
      %1076 = vmatpush2.msra.mxu0 0.0
      %1077 = vmatprep.subr.mxu0 0.0
      %1078 = vmatpush2.msra.mxu0 0.0
      %1079 = vmatprep.subr.mxu0 0.0
      %1080 = vmatpush2.msra.mxu0 0.0
      %1081 = vmatprep.subr.mxu0 0.0
      %1082 = vmatpush2.msra.mxu0 0.0
      %1083 = vmatprep.subr.mxu0 0.0
      %1084 = vmatpush2.msra.mxu0 0.0
      %1085 = vmatprep.mubr.f32.mxu0 0.0
      %1086 = vmatmul.mubr.f32.gmra.mxu0 %v974
      %v1087 = vpop.f32.mrf.mxu0
      %v1088 = vadd.f32 %v970, %v1087
      %v1089 = vpop.f32.mrf.mxu0
      %1090 = vmatprep.mubr.f32.mxu0 0.0
      %1091 = vmatmul.mubr.f32.gmra.mxu0 %v977
      %v1092 = vpop.f32.mrf.mxu0
      %v1093 = vadd.f32 %v970, %v1092
      %v1094 = vpop.f32.mrf.mxu0
      %1095 = vmatprep.mubr.f32.mxu0 0.0
      %1096 = vmatmul.mubr.f32.gmra.mxu0 %v980
      %v1097 = vpop.f32.mrf.mxu0
      %v1098 = vadd.f32 %v970, %v1097
      %v1099 = vpop.f32.mrf.mxu0
      %1100 = vmatprep.mubr.f32.mxu0 0.0
      %1101 = vmatmul.mubr.f32.gmra.mxu0 %v983
      %v1102 = vpop.f32.mrf.mxu0
      %v1103 = vadd.f32 %v970, %v1102
      %v1104 = vpop.f32.mrf.mxu0
      %1105 = vmatprep.mubr.f32.mxu0 0.0
      %1106 = vmatmul.mubr.f32.gmra.mxu0 %v986
      %v1107 = vpop.f32.mrf.mxu0
      %v1108 = vadd.f32 %v970, %v1107
      %v1109 = vpop.f32.mrf.mxu0
      %1110 = vmatprep.mubr.f32.mxu0 0.0
      %1111 = vmatmul.mubr.f32.gmra.mxu0 %v989
      %v1112 = vpop.f32.mrf.mxu0
      %v1113 = vadd.f32 %v970, %v1112
      %v1114 = vpop.f32.mrf.mxu0
      %1115 = vmatprep.mubr.f32.mxu0 0.0
      %1116 = vmatmul.mubr.f32.gmra.mxu0 %v992
      %v1117 = vpop.f32.mrf.mxu0
      %v1118 = vadd.f32 %v970, %v1117
      %v1119 = vpop.f32.mrf.mxu0
      %1120 = vmatprep.mubr.f32.mxu0 0.0
      %1121 = vmatmul.mubr.f32.gmra.mxu0 %v995
      %v1122 = vpop.f32.mrf.mxu0
      %v1123 = vadd.f32 %v970, %v1122
      %v1124 = vpop.f32.mrf.mxu0
      %1125 = vmatprep.mubr.f32.mxu0 0.0
      %1126 = vmatmul.mubr.f32.gmra.mxu0 %v998
      %v1127 = vpop.f32.mrf.mxu0
      %v1128 = vadd.f32 %v970, %v1127
      %v1129 = vpop.f32.mrf.mxu0
      %1130 = vmatprep.mubr.f32.mxu0 0.0
      %1131 = vmatmul.mubr.f32.gmra.mxu0 %v1001
      %v1132 = vpop.f32.mrf.mxu0
      %v1133 = vadd.f32 %v970, %v1132
      %v1134 = vpop.f32.mrf.mxu0
      %1135 = vmatprep.mubr.f32.mxu0 0.0
      %1136 = vmatmul.mubr.f32.gmra.mxu0 %v1004
      %v1137 = vpop.f32.mrf.mxu0
      %v1138 = vadd.f32 %v970, %v1137
      %v1139 = vpop.f32.mrf.mxu0
      %1140 = vmatprep.mubr.f32.mxu0 0.0
      %1141 = vmatmul.mubr.f32.gmra.mxu0 %v1007
      %v1142 = vpop.f32.mrf.mxu0
      %v1143 = vadd.f32 %v970, %v1142
      %v1144 = vpop.f32.mrf.mxu0
      %1145 = vmatprep.mubr.f32.mxu0 0.0
      %1146 = vmatmul.mubr.f32.gmra.mxu0 %v1010
      %v1147 = vpop.f32.mrf.mxu0
      %v1148 = vadd.f32 %v970, %v1147
      %v1149 = vpop.f32.mrf.mxu0
      %1150 = vmatprep.mubr.f32.mxu0 0.0
      %1151 = vmatmul.mubr.f32.gmra.mxu0 %v1013
      %v1152 = vpop.f32.mrf.mxu0
      %v1153 = vadd.f32 %v970, %v1152
      %v1154 = vpop.f32.mrf.mxu0
      %1155 = vmatprep.mubr.f32.mxu0 0.0
      %1156 = vmatmul.mubr.f32.gmra.mxu0 %v1016
      %v1157 = vpop.f32.mrf.mxu0
      %v1158 = vadd.f32 %v970, %v1157
      %v1159 = vpop.f32.mrf.mxu0
      %1160 = vmatprep.mubr.f32.mxu0 0.0
      %1161 = vmatmul.mubr.f32.gmra.mxu0 %v1019
      %v1162 = vpop.f32.mrf.mxu0
      %v1163 = vadd.f32 %v970, %v1162
      %v1164 = vpop.f32.mrf.mxu0
      %1165 = vdwg.mxu0
      %v1166 = vmax.f32 %v1088, 0.0
      %v1167 = vmax.f32 %v1093, 0.0
      %v1168 = vmax.f32 %v1098, 0.0
      %v1169 = vmax.f32 %v1103, 0.0
      %v1170 = vmax.f32 %v1108, 0.0
      %v1171 = vmax.f32 %v1113, 0.0
      %v1172 = vmax.f32 %v1118, 0.0
      %v1173 = vmax.f32 %v1123, 0.0
      %v1174 = vmax.f32 %v1128, 0.0
      %v1175 = vmax.f32 %v1133, 0.0
      %v1176 = vmax.f32 %v1138, 0.0
      %v1177 = vmax.f32 %v1143, 0.0
      %v1178 = vmax.f32 %v1148, 0.0
      %v1179 = vmax.f32 %v1153, 0.0
      %v1180 = vmax.f32 %v1158, 0.0
      %v1181 = vmax.f32 %v1163, 0.0
      %s1182 = smul.u32 %s304, 16
      %s1183 = scalar_lea.vmem %s292, %s1182
      %v1184 = vld [vmem:[%s1183] sm:$0xff]
      %v1185 = vld [vmem:[%s1183 + $0x8] sm:$0xff]
      %v1186 = vld [vmem:[%s1183 + $0x10] sm:$0xff]
      %v1187 = vld [vmem:[%s1183 + $0x18] sm:$0xff]
      %v1188 = vld [vmem:[%s1183 + $0x20] sm:$0xff]
      %v1189 = vld [vmem:[%s1183 + $0x28] sm:$0xff]
      %v1190 = vld [vmem:[%s1183 + $0x30] sm:$0xff]
      %v1191 = vld [vmem:[%s1183 + $0x38] sm:$0xff]
      %v1192 = vld [vmem:[%s1183 + $0x40] sm:$0xff]
      %v1193 = vld [vmem:[%s1183 + $0x48] sm:$0xff]
      %v1194 = vld [vmem:[%s1183 + $0x50] sm:$0xff]
      %v1195 = vld [vmem:[%s1183 + $0x58] sm:$0xff]
      %v1196 = vld [vmem:[%s1183 + $0x60] sm:$0xff]
      %v1197 = vld [vmem:[%s1183 + $0x68] sm:$0xff]
      %v1198 = vld [vmem:[%s1183 + $0x70] sm:$0xff]
      %v1199 = vld [vmem:[%s1183 + $0x78] sm:$0xff]
      %v1200 = vadd.f32 %v1166, %v1184
      %v1201 = vadd.f32 %v1167, %v1185
      %v1202 = vadd.f32 %v1168, %v1186
      %v1203 = vadd.f32 %v1169, %v1187
      %v1204 = vadd.f32 %v1170, %v1188
      %v1205 = vadd.f32 %v1171, %v1189
      %v1206 = vadd.f32 %v1172, %v1190
      %v1207 = vadd.f32 %v1173, %v1191
      %v1208 = vadd.f32 %v1174, %v1192
      %v1209 = vadd.f32 %v1175, %v1193
      %v1210 = vadd.f32 %v1176, %v1194
      %v1211 = vadd.f32 %v1177, %v1195
      %v1212 = vadd.f32 %v1178, %v1196
      %v1213 = vadd.f32 %v1179, %v1197
      %v1214 = vadd.f32 %v1180, %v1198
      %v1215 = vadd.f32 %v1181, %v1199
      %vm1216 = vcmask 31744
      %1217 = vst.msk [vmem:[%s302] sm:$0xff] %vm1216, %v1200
      %1218 = vst.msk [vmem:[%s302 + $0x8] sm:$0xff] %vm1216, %v1201
      %1219 = vst.msk [vmem:[%s302 + $0x10] sm:$0xff] %vm1216, %v1202
      %1220 = vst.msk [vmem:[%s302 + $0x18] sm:$0xff] %vm1216, %v1203
      %1221 = vst.msk [vmem:[%s302 + $0x20] sm:$0xff] %vm1216, %v1204
      %1222 = vst.msk [vmem:[%s302 + $0x28] sm:$0xff] %vm1216, %v1205
      %1223 = vst.msk [vmem:[%s302 + $0x30] sm:$0xff] %vm1216, %v1206
      %1224 = vst.msk [vmem:[%s302 + $0x38] sm:$0xff] %vm1216, %v1207
      %1225 = vst.msk [vmem:[%s302 + $0x40] sm:$0xff] %vm1216, %v1208
      %1226 = vst.msk [vmem:[%s302 + $0x48] sm:$0xff] %vm1216, %v1209
      %1227 = vst.msk [vmem:[%s302 + $0x50] sm:$0xff] %vm1216, %v1210
      %1228 = vst.msk [vmem:[%s302 + $0x58] sm:$0xff] %vm1216, %v1211
      %1229 = vst.msk [vmem:[%s302 + $0x60] sm:$0xff] %vm1216, %v1212
      %1230 = vst.msk [vmem:[%s302 + $0x68] sm:$0xff] %vm1216, %v1213
      %1231 = vst.msk [vmem:[%s302 + $0x70] sm:$0xff] %vm1216, %v1214
      %1232 = vst.msk [vmem:[%s302 + $0x78] sm:$0xff] %vm1216, %v1215
      %s1233 = smul.u32 8, %s23
      %p1234 = scmp.lt.s32.totalorder %s22, 1
      %s1235 = scalar_select %p1234, %s22, 1
      %p1236 = scmp.lt.s32.totalorder %s1233, 15
      %s1237 = scalar_select %p1236, %s1233, 15
      %s1238 = smul.addr %s1237, 2
      %s1239 = smul.addr %s1235, 32
      %s1240 = sadd.s32 %s1238, %s1239
      %s1241 = smul.addr %s1240, 8
      %s1242 = scalar_lea.vmem %s7, %s1241
      // Predicated region
      $region56: #{inverted_block_forward.1} parent=47 // pred_check
        %p1243 = pneg %p202
      $region57: #{inverted_block_forward.1} parent=47 // pred_check_branch
        %1245 = sbr.rel (%p1243) target = $region59
      $region58: #{inverted_block_forward.1} parent=47 // pred_region
        %s1246 = smul.u32 8, %s23
      $region59: #{inverted_block_forward.1} parent=47 // pred_fallthru
        _
    $region48: #{inverted_block_forward.1} parent=5 // pred_fallthru
      _
    %p1247 = scmp.le.s32.totalorder 2, %s13
    // Predicated region
    $region60: #{inverted_block_forward.1} parent=5 // pred_check
      %p1248 = pneg %p1247
    $region61: #{inverted_block_forward.1} parent=5 // pred_check_branch
      %1250 = sbr.rel (%p1248) target = $region63
    $region62: #{inverted_block_forward.1} parent=5 // pred_region
      %s1251 = ssub.s32 %s13, 2
      // Predicated region
      $region64: #{inverted_block_forward.1} parent=62 // pred_check
        %p1252 = pneg %p208
      $region65: #{inverted_block_forward.1} parent=62 // pred_check_branch
        %1254 = sbr.rel (%p1252) target = $region67
      $region66: #{inverted_block_forward.1} parent=62 // pred_region
        %s1255 = smul.u32 8, %s25
        %p1256 = scmp.lt.s32.totalorder %s24, 1
        %s1257 = scalar_select %p1256, %s24, 1
        %p1258 = scmp.lt.s32.totalorder %s1255, 15
        %s1259 = scalar_select %p1258, %s1255, 15
        %s1260 = smul.addr %s1259, 2
        %s1261 = smul.addr %s1257, 32
        %s1262 = sadd.s32 %s1260, %s1261
        %s1263 = smul.addr %s1262, 8
        %s1264 = scalar_lea.vmem %s7, %s1263
      $region67: #{inverted_block_forward.1} parent=62 // pred_fallthru
        _
    $region63: #{inverted_block_forward.1} parent=5 // pred_fallthru
      _
  $region6: #{inverted_block_forward.1} parent=0 // loop_footer
    %s17 = sadd.s32 1, %s13
  $region7: #{inverted_block_forward.1} parent=0 // loop_footer_branch
    %12 = sbr.rel target = $region3
  $region8: #{inverted_block_forward.1} parent=0 // loop_exit
    _

</llo_original>
